<compile_context>
chip_gen: v7x
topology: tpu7x:2x2x1
jax: 0.10.0
libtpu: 0.0.40
codegen_flags: <defaults>
</compile_context>

<pallas_src>
import functools

import jax
import jax.numpy as jnp
import numpy as np
from jax import lax
from jax.experimental import pallas as pl
from jax.experimental.pallas import tpu as pltpu


def _grid_sample_kernel(img_ref, grid_ref, out_ref, *, C, H, W):
    tP = grid_ref.shape[-1]

    img = img_ref[0]            # [C*H, W]
    g = grid_ref[0]             # [2, tP]
    gx = g[0:1, :]              # [1, tP]  normalized x
    gy = g[1:2, :]              # [1, tP]  normalized y

    # unnormalize (align_corners=False):  ix = (x+1)*W/2 - 0.5
    ix = (gx + 1.0) * (W * 0.5) - 0.5
    iy = (gy + 1.0) * (H * 0.5) - 0.5

    x0f = jnp.floor(ix)
    y0f = jnp.floor(iy)
    fx = ix - x0f
    fy = iy - y0f
    x0 = x0f.astype(jnp.int32)
    y0 = y0f.astype(jnp.int32)
    x1 = x0 + 1
    y1 = y0 + 1

    # zeros padding: fold corner validity into the [1, tP] weights.
    wx0 = jnp.where((x0 >= 0) & (x0 < W), 1.0 - fx, 0.0)
    wx1 = jnp.where((x1 >= 0) & (x1 < W), fx, 0.0)
    wy0 = jnp.where((y0 >= 0) & (y0 < H), 1.0 - fy, 0.0)
    wy1 = jnp.where((y1 >= 0) & (y1 < H), fy, 0.0)

    # Separable selector matrices via nested selects (no adds, no [HW,tP] temp).
    cols = lax.broadcasted_iota(jnp.int32, (W, tP), 0)          # [W, tP]
    dx = cols - x0
    Mx = jnp.where(dx == 0, wx0, jnp.where(dx == 1, wx1, 0.0))  # [W, tP]

    rows = lax.broadcasted_iota(jnp.int32, (H, tP), 0)          # [H, tP]
    dy = rows - y0
    My = jnp.where(dy == 0, wy0, jnp.where(dy == 1, wy1, 0.0))  # [H, tP]

    # MXU: contract W.  Z[c*H+h, p] = sum_w img[c,h,w] * Mx[w,p]
    z = jnp.dot(img, Mx, preferred_element_type=jnp.float32,
                precision=lax.Precision.HIGHEST)                # [C*H, tP]

    # VPU mul + XLU sublane-reduce over H, per channel (C is tiny & static).
    outs = []
    for c in range(C):
        zc = z[c * H:(c + 1) * H, :]                            # [H, tP]
        outs.append(jnp.sum(zc * My, axis=0, keepdims=True))    # [1, tP]
    out = jnp.concatenate(outs, axis=0)                         # [C, tP]
    out_ref[0] = out.astype(out_ref.dtype)


def _vmem_ceiling_bytes():
    """Per-generation VMEM budget with headroom for Mosaic scratch."""
    try:
        cap = pltpu.get_tpu_info().vmem_capacity_bytes
    except Exception:
        cap = 64 * 1024 * 1024   # conservative (v7x) fallback
    return max(cap - 16 * 1024 * 1024, cap // 2)


def _footprint_bytes(C, H, W, tP):
    # Double-buffered pipeline blocks (img, grid, out).
    blocks = 2 * 4 * (C * H * W + 2 * tP + C * tP)
    # Live in-kernel temporaries: Z [C*H,tP] + per-channel products,
    # Mx/My + int iotas, with slack.
    temps = 4 * (2 * C * H * tP + 6 * (H + W) * tP)
    return blocks + temps


def _pick_p_tile(P_pad, B, C, H, W, ceiling):
    cands = [t for t in (1024, 512, 256, 128) if P_pad % t == 0]
    fitting = [t for t in cands if _footprint_bytes(C, H, W, t) <= ceiling]
    if not fitting:
        # TODO(synk): add an H-reduction grid axis + accumulator for this case.
        fitting = [cands[-1]]
    tP = fitting[0]                     # largest tile that fits
    # Megacore (v7x): prefer >= 2 grid steps when batch is small.
    if B * (P_pad // tP) < 2:
        for t in fitting:               # descending -> first hit is the largest
            if B * (P_pad // t) >= 2:
                tP = t
                break
    return tP


def spatial_flow_fields_forward(imgs, xform_params):
    """imgs: [B, C, H, W] f32; xform_params (flow grid): [B, Hout, Wout, 2] f32."""
    B, C, H, W = imgs.shape
    _, Hout, Wout, _ = xform_params.shape
    P = Hout * Wout
    P_pad = ((P + 127) // 128) * 128    # lane-dense, unmasked output stores

    imgs2 = imgs.reshape(B, C * H, W)                                   # free reshape
    grid_flat = jnp.transpose(xform_params.reshape(B, P, 2), (0, 2, 1))  # [B, 2, P]
    if P_pad != P:
        grid_flat = jnp.pad(grid_flat, ((0, 0), (0, 0), (0, P_pad - P)))

    ceiling = _vmem_ceiling_bytes()
    tP = _pick_p_tile(P_pad, B, C, H, W, ceiling)
    n_p = P_pad // tP

    needed = _footprint_bytes(C, H, W, tP)
    vmem_limit = int(min(ceiling, max(2 * needed, 32 * 1024 * 1024)))

    # Advisory cost so XLA overlaps neighbouring ops with this call.
    flops = int(B * (2 * C * H * W * P_pad        # MXU matmul
                     + 2 * C * H * P_pad          # weighted reduce
                     + 12 * (H + W) * P_pad))     # Mx/My build
    bytes_accessed = int(4 * B * (C * H * W + 2 * P_pad + C * P_pad))
    cost = pl.CostEstimate(flops=flops, transcendentals=0,
                           bytes_accessed=bytes_accessed)

    kernel = functools.partial(_grid_sample_kernel, C=C, H=H, W=W)
    out_flat = pl.pallas_call(
        kernel,
        out_shape=jax.ShapeDtypeStruct((B, C, P_pad), imgs.dtype),
        grid_spec=pltpu.PrefetchScalarGridSpec(
            num_scalar_prefetch=0,
            grid=(B, n_p),
            in_specs=[pl.BlockSpec((1, C * H, W), lambda b, p: (b, 0, 0)),
                      pl.BlockSpec((1, 2, tP), lambda b, p: (b, 0, p))],
            out_specs=pl.BlockSpec((1, C, tP), lambda b, p: (b, 0, p)),
        ),
        compiler_params=pltpu.CompilerParams(
            dimension_semantics=("parallel", "parallel"),
            vmem_limit_bytes=vmem_limit),
        cost_estimate=cost,
    )(imgs2, grid_flat)

    return out_flat[:, :, :P].reshape(B, C, Hout, Wout)


def affine_grid_identity(B, H, W):
    """torch.nn.functional.affine_grid(eye(2,3), (B,C,H,W), align_corners=False)."""
    xs = (jnp.arange(W, dtype=jnp.float32) + 0.5) * (2.0 / W) - 1.0
    ys = (jnp.arange(H, dtype=jnp.float32) + 0.5) * (2.0 / H) - 1.0
    gx, gy = jnp.meshgrid(xs, ys)              # each [H, W]
    grid = jnp.stack([gx, gy], axis=-1)        # [H, W, 2]
    return jnp.broadcast_to(grid, (B, H, W, 2))


def grid_sample_ref(imgs, grid):
    """Pure-JAX reference for grid_sample(bilinear, zeros, align_corners=False)."""
    B, C, H, W = imgs.shape
    _, Ho, Wo, _ = grid.shape
    x = grid[..., 0].reshape(B, -1)
    y = grid[..., 1].reshape(B, -1)
    ix = (x + 1.0) * W / 2.0 - 0.5
    iy = (y + 1.0) * H / 2.0 - 0.5
    x0 = jnp.floor(ix).astype(jnp.int32)
    y0 = jnp.floor(iy).astype(jnp.int32)
    x1 = x0 + 1
    y1 = y0 + 1
    fx = ix - x0
    fy = iy - y0
    imgs_flat = imgs.reshape(B, C, H * W)

    def gather(xc, yc, w):
        valid = (xc >= 0) & (xc < W) & (yc >= 0) & (yc < H)
        idx = jnp.clip(yc, 0, H - 1) * W + jnp.clip(xc, 0, W - 1)
        vals = jnp.take_along_axis(
            imgs_flat,
            jnp.broadcast_to(idx[:, None, :], (B, C, idx.shape[-1])),
            axis=2)
        return vals * (valid[:, None, :] * w[:, None, :])

    out = (gather(x0, y0, (1 - fx) * (1 - fy)) + gather(x1, y0, fx * (1 - fy))
           + gather(x0, y1, (1 - fx) * fy) + gather(x1, y1, fx * fy))
    return out.reshape(B, C, Ho, Wo)


if __name__ == "__main__":
    B, C, H, W = 2, 4, 16, 16
    pixel_shift_budget = 2

    key = jax.random.PRNGKey(0)
    k_img, k_pert = jax.random.split(key)
    imgs = jax.random.uniform(k_img, (B, C, H, W), dtype=jnp.float32)

    # Parameter init (random_init=True path): identity affine grid + small
    # deterministic uniform perturbation within the per-pixel shift budget.
    identity = affine_grid_identity(B, H, W)
    min_shift = min(2.0 / H * pixel_shift_budget, 2.0 / W * pixel_shift_budget)
    xform_params = identity + jax.random.uniform(
        k_pert, identity.shape, jnp.float32, -min_shift, min_shift)

    out = spatial_flow_fields_forward(imgs, xform_params)
    out = jax.block_until_ready(out)

    ref = grid_sample_ref(imgs, xform_params)
    assert out.shape == (B, C, H, W)
    np.testing.assert_allclose(np.asarray(out), np.asarray(ref),
                               atol=1e-5, rtol=1e-5)
    print("KERNEL_OK")
</pallas_src>

<mosaic_0001>
module attributes {stable_mosaic.version = 11 : i64} {
  func.func @_grid_sample_kernel(%arg0: i32, %arg1: i32, %arg2: memref<1x64x16xf32, #tpu.memory_space<vmem>>, %arg3: memref<1x2x256xf32, #tpu.memory_space<vmem>>, %arg4: memref<1x4x256xf32, #tpu.memory_space<vmem>>) attributes {dimension_semantics = [#tpu.dimension_semantics<parallel>, #tpu.dimension_semantics<parallel>], iteration_bounds = array<i64: 2, 1>, scalar_prefetch = 0 : i64, scratch_operands = 0 : i64, tpu.core_type = #tpu.core_type<tc>, window_params = [{transform_indices = @transform_0, window_bounds = array<i64: 1, 64, 16>}, {transform_indices = @transform_1, window_bounds = array<i64: 1, 2, 256>}, {transform_indices = @transform_2, window_bounds = array<i64: 1, 4, 256>}]} {
    %c0 = arith.constant 0 : index
    %c0_0 = arith.constant 0 : index
    %c0_1 = arith.constant 0 : index
    %0 = vector.load %arg2[%c0, %c0_0, %c0_1] : memref<1x64x16xf32, #tpu.memory_space<vmem>>, vector<1x64x16xf32>
    %1 = vector.shape_cast %0 : vector<1x64x16xf32> to vector<64x16xf32>
    %c0_2 = arith.constant 0 : index
    %c0_3 = arith.constant 0 : index
    %c0_4 = arith.constant 0 : index
    %2 = vector.load %arg3[%c0_2, %c0_3, %c0_4] : memref<1x2x256xf32, #tpu.memory_space<vmem>>, vector<1x2x256xf32>
    %3 = vector.shape_cast %2 : vector<1x2x256xf32> to vector<2x256xf32>
    %4 = vector.extract_strided_slice %3 {offsets = [0, 0], sizes = [1, 256], strides = [1, 1]} : vector<2x256xf32> to vector<1x256xf32>
    %5 = vector.extract_strided_slice %3 {offsets = [1, 0], sizes = [1, 256], strides = [1, 1]} : vector<2x256xf32> to vector<1x256xf32>
    %cst = arith.constant 1.000000e+00 : f32
    %6 = vector.broadcast %cst : f32 to vector<1x256xf32>
    %7 = arith.addf %4, %6 : vector<1x256xf32>
    %cst_5 = arith.constant 8.000000e+00 : f32
    %8 = vector.broadcast %cst_5 : f32 to vector<1x256xf32>
    %9 = arith.mulf %7, %8 : vector<1x256xf32>
    %cst_6 = arith.constant 5.000000e-01 : f32
    %10 = vector.broadcast %cst_6 : f32 to vector<1x256xf32>
    %11 = arith.subf %9, %10 : vector<1x256xf32>
    %cst_7 = arith.constant 1.000000e+00 : f32
    %12 = vector.broadcast %cst_7 : f32 to vector<1x256xf32>
    %13 = arith.addf %5, %12 : vector<1x256xf32>
    %cst_8 = arith.constant 8.000000e+00 : f32
    %14 = vector.broadcast %cst_8 : f32 to vector<1x256xf32>
    %15 = arith.mulf %13, %14 : vector<1x256xf32>
    %cst_9 = arith.constant 5.000000e-01 : f32
    %16 = vector.broadcast %cst_9 : f32 to vector<1x256xf32>
    %17 = arith.subf %15, %16 : vector<1x256xf32>
    %18 = math.floor %11 : vector<1x256xf32>
    %19 = math.floor %17 : vector<1x256xf32>
    %20 = arith.subf %11, %18 : vector<1x256xf32>
    %21 = arith.subf %17, %19 : vector<1x256xf32>
    %22 = arith.fptosi %18 : vector<1x256xf32> to vector<1x256xi32>
    %23 = arith.fptosi %19 : vector<1x256xf32> to vector<1x256xi32>
    %c1_i32 = arith.constant 1 : i32
    %24 = vector.broadcast %c1_i32 : i32 to vector<1x256xi32>
    %25 = arith.addi %22, %24 : vector<1x256xi32>
    %c1_i32_10 = arith.constant 1 : i32
    %26 = vector.broadcast %c1_i32_10 : i32 to vector<1x256xi32>
    %27 = arith.addi %23, %26 : vector<1x256xi32>
    %c0_i32 = arith.constant 0 : i32
    %28 = vector.broadcast %c0_i32 : i32 to vector<1x256xi32>
    %29 = arith.cmpi sge, %22, %28 : vector<1x256xi32>
    %c16_i32 = arith.constant 16 : i32
    %30 = vector.broadcast %c16_i32 : i32 to vector<1x256xi32>
    %31 = arith.cmpi slt, %22, %30 : vector<1x256xi32>
    %32 = arith.andi %29, %31 : vector<1x256xi1>
    %cst_11 = arith.constant 1.000000e+00 : f32
    %33 = vector.broadcast %cst_11 : f32 to vector<1x256xf32>
    %34 = arith.subf %33, %20 : vector<1x256xf32>
    %cst_12 = arith.constant 0.000000e+00 : f32
    %35 = vector.broadcast %cst_12 : f32 to vector<1x256xf32>
    %36 = arith.select %32, %34, %35 : vector<1x256xi1>, vector<1x256xf32>
    %c0_i32_13 = arith.constant 0 : i32
    %37 = vector.broadcast %c0_i32_13 : i32 to vector<1x256xi32>
    %38 = arith.cmpi sge, %25, %37 : vector<1x256xi32>
    %c16_i32_14 = arith.constant 16 : i32
    %39 = vector.broadcast %c16_i32_14 : i32 to vector<1x256xi32>
    %40 = arith.cmpi slt, %25, %39 : vector<1x256xi32>
    %41 = arith.andi %38, %40 : vector<1x256xi1>
    %cst_15 = arith.constant 0.000000e+00 : f32
    %42 = vector.broadcast %cst_15 : f32 to vector<1x256xf32>
    %43 = arith.select %41, %20, %42 : vector<1x256xi1>, vector<1x256xf32>
    %c0_i32_16 = arith.constant 0 : i32
    %44 = vector.broadcast %c0_i32_16 : i32 to vector<1x256xi32>
    %45 = arith.cmpi sge, %23, %44 : vector<1x256xi32>
    %c16_i32_17 = arith.constant 16 : i32
    %46 = vector.broadcast %c16_i32_17 : i32 to vector<1x256xi32>
    %47 = arith.cmpi slt, %23, %46 : vector<1x256xi32>
    %48 = arith.andi %45, %47 : vector<1x256xi1>
    %cst_18 = arith.constant 1.000000e+00 : f32
    %49 = vector.broadcast %cst_18 : f32 to vector<1x256xf32>
    %50 = arith.subf %49, %21 : vector<1x256xf32>
    %cst_19 = arith.constant 0.000000e+00 : f32
    %51 = vector.broadcast %cst_19 : f32 to vector<1x256xf32>
    %52 = arith.select %48, %50, %51 : vector<1x256xi1>, vector<1x256xf32>
    %c0_i32_20 = arith.constant 0 : i32
    %53 = vector.broadcast %c0_i32_20 : i32 to vector<1x256xi32>
    %54 = arith.cmpi sge, %27, %53 : vector<1x256xi32>
    %c16_i32_21 = arith.constant 16 : i32
    %55 = vector.broadcast %c16_i32_21 : i32 to vector<1x256xi32>
    %56 = arith.cmpi slt, %27, %55 : vector<1x256xi32>
    %57 = arith.andi %54, %56 : vector<1x256xi1>
    %cst_22 = arith.constant 0.000000e+00 : f32
    %58 = vector.broadcast %cst_22 : f32 to vector<1x256xf32>
    %59 = arith.select %57, %21, %58 : vector<1x256xi1>, vector<1x256xf32>
    %60 = tpu.iota {dimensions = array<i32: 0>} : vector<16x256xi32>
    %61 = vector.broadcast %22 : vector<1x256xi32> to vector<16x256xi32>
    %62 = arith.subi %60, %61 : vector<16x256xi32>
    %c0_i32_23 = arith.constant 0 : i32
    %63 = vector.broadcast %c0_i32_23 : i32 to vector<16x256xi32>
    %64 = arith.cmpi eq, %62, %63 : vector<16x256xi32>
    %c1_i32_24 = arith.constant 1 : i32
    %65 = vector.broadcast %c1_i32_24 : i32 to vector<16x256xi32>
    %66 = arith.cmpi eq, %62, %65 : vector<16x256xi32>
    %cst_25 = arith.constant 0.000000e+00 : f32
    %67 = vector.shape_cast %43 : vector<1x256xf32> to vector<1x256xf32>
    %68 = vector.broadcast %67 : vector<1x256xf32> to vector<16x256xf32>
    %69 = vector.broadcast %cst_25 : f32 to vector<16x256xf32>
    %70 = arith.select %66, %68, %69 : vector<16x256xi1>, vector<16x256xf32>
    %71 = vector.shape_cast %36 : vector<1x256xf32> to vector<1x256xf32>
    %72 = vector.broadcast %71 : vector<1x256xf32> to vector<16x256xf32>
    %73 = arith.select %64, %72, %70 : vector<16x256xi1>, vector<16x256xf32>
    %74 = tpu.iota {dimensions = array<i32: 0>} : vector<16x256xi32>
    %75 = vector.broadcast %23 : vector<1x256xi32> to vector<16x256xi32>
    %76 = arith.subi %74, %75 : vector<16x256xi32>
    %c0_i32_26 = arith.constant 0 : i32
    %77 = vector.broadcast %c0_i32_26 : i32 to vector<16x256xi32>
    %78 = arith.cmpi eq, %76, %77 : vector<16x256xi32>
    %c1_i32_27 = arith.constant 1 : i32
    %79 = vector.broadcast %c1_i32_27 : i32 to vector<16x256xi32>
    %80 = arith.cmpi eq, %76, %79 : vector<16x256xi32>
    %cst_28 = arith.constant 0.000000e+00 : f32
    %81 = vector.shape_cast %59 : vector<1x256xf32> to vector<1x256xf32>
    %82 = vector.broadcast %81 : vector<1x256xf32> to vector<16x256xf32>
    %83 = vector.broadcast %cst_28 : f32 to vector<16x256xf32>
    %84 = arith.select %80, %82, %83 : vector<16x256xi1>, vector<16x256xf32>
    %85 = vector.shape_cast %52 : vector<1x256xf32> to vector<1x256xf32>
    %86 = vector.broadcast %85 : vector<1x256xf32> to vector<16x256xf32>
    %87 = arith.select %78, %86, %84 : vector<16x256xi1>, vector<16x256xf32>
    %cst_29 = arith.constant dense<0.000000e+00> : vector<64x256xf32>
    %88 = tpu.matmul %1, %73, %cst_29 {dimension_numbers = #tpu.dot_dimension_numbers<[1], [0], [0], [1], [0, 0, 1, 1], [], []>, precision = #tpu.contract_precision<fp32>} : vector<64x16xf32>, vector<16x256xf32>, vector<64x256xf32> -> vector<64x256xf32>
    %89 = vector.extract_strided_slice %88 {offsets = [0, 0], sizes = [16, 256], strides = [1, 1]} : vector<64x256xf32> to vector<16x256xf32>
    %90 = arith.mulf %89, %87 : vector<16x256xf32>
    %cst_30 = arith.constant dense<0.000000e+00> : vector<256xf32>
    %91 = vector.multi_reduction <add>, %90, %cst_30 [0] : vector<16x256xf32> to vector<256xf32>
    %92 = vector.shape_cast %91 : vector<256xf32> to vector<1x256xf32>
    %93 = vector.extract_strided_slice %88 {offsets = [16, 0], sizes = [16, 256], strides = [1, 1]} : vector<64x256xf32> to vector<16x256xf32>
    %94 = arith.mulf %93, %87 : vector<16x256xf32>
    %cst_31 = arith.constant dense<0.000000e+00> : vector<256xf32>
    %95 = vector.multi_reduction <add>, %94, %cst_31 [0] : vector<16x256xf32> to vector<256xf32>
    %96 = vector.shape_cast %95 : vector<256xf32> to vector<1x256xf32>
    %97 = vector.extract_strided_slice %88 {offsets = [32, 0], sizes = [16, 256], strides = [1, 1]} : vector<64x256xf32> to vector<16x256xf32>
    %98 = arith.mulf %97, %87 : vector<16x256xf32>
    %cst_32 = arith.constant dense<0.000000e+00> : vector<256xf32>
    %99 = vector.multi_reduction <add>, %98, %cst_32 [0] : vector<16x256xf32> to vector<256xf32>
    %100 = vector.shape_cast %99 : vector<256xf32> to vector<1x256xf32>
    %101 = vector.extract_strided_slice %88 {offsets = [48, 0], sizes = [16, 256], strides = [1, 1]} : vector<64x256xf32> to vector<16x256xf32>
    %102 = arith.mulf %101, %87 : vector<16x256xf32>
    %cst_33 = arith.constant dense<0.000000e+00> : vector<256xf32>
    %103 = vector.multi_reduction <add>, %102, %cst_33 [0] : vector<16x256xf32> to vector<256xf32>
    %104 = vector.shape_cast %103 : vector<256xf32> to vector<1x256xf32>
    %105 = tpu.concatenate %92, %96, %100, %104 in 0 : vector<1x256xf32>, vector<1x256xf32>, vector<1x256xf32>, vector<1x256xf32> -> vector<4x256xf32>
    %c0_34 = arith.constant 0 : index
    %c0_35 = arith.constant 0 : index
    %c0_36 = arith.constant 0 : index
    %106 = vector.load %arg4[%c0_34, %c0_35, %c0_36] : memref<1x4x256xf32, #tpu.memory_space<vmem>>, vector<1x4x256xf32>
    %107 = vector.shape_cast %106 : vector<1x4x256xf32> to vector<4x256xf32>
    %108 = vector.shape_cast %105 : vector<4x256xf32> to vector<1x4x256xf32>
    tpu.vector_store %arg4[%c0_34, %c0_35, %c0_36], %108 {strides = array<i32>} : memref<1x4x256xf32, #tpu.memory_space<vmem>>, vector<1x4x256xf32>,
    return
  }
  func.func @transform_0(%arg0: i32, %arg1: i32) -> (i32, i32, i32) {
    %c0_i32 = arith.constant 0 : i32
    %c0_i32_0 = arith.constant 0 : i32
    %c0_i32_1 = arith.constant 0 : i32
    return %arg0, %c0_i32, %c0_i32_0 : i32, i32, i32
  }
  func.func @transform_1(%arg0: i32, %arg1: i32) -> (i32, i32, i32) {
    %c0_i32 = arith.constant 0 : i32
    %c0_i32_0 = arith.constant 0 : i32
    return %arg0, %c0_i32, %arg1 : i32, i32, i32
  }
  func.func @transform_2(%arg0: i32, %arg1: i32) -> (i32, i32, i32) {
    %c0_i32 = arith.constant 0 : i32
    %c0_i32_0 = arith.constant 0 : i32
    return %arg0, %c0_i32, %arg1 : i32, i32, i32
  }
}

</mosaic_0001>

<llo_original>
// kernel: tpu_custom_call.1
$region0: #{tpu_custom_call.1}
  #allocation0 [shape = 'u32[]', space=smem, size = 0x4, offset = 0x4, fixed_abs, tag = 'smem constant byte address 0x4 - core index']
  #allocation1 [shape = 'u32[144,128]{1,0:T(1,128)}', space=vmem, size = 0x12000, scoped, tag = 'internal scratch']
  %s0 = inlined_call_operand.vmem [shape: f32[2,64,16], index: 0, kind: input, shape index: {}]
  %s1 = inlined_call_operand.vmem [shape: f32[2,2,256], index: 1, kind: input, shape index: {}]
  %s2 = inlined_call_operand.hbm [shape: f32[2,4,256], index: 2, kind: output, shape index: {}]
  %s3 = sld [smem:[#allocation0]]
  $region41: #{tpu_custom_call.1} parent=0
    _
  %s5 = ssub.s32 1, %s3
  %s6 = scalar_select 0, %s5, %s3
  $region1: #{tpu_custom_call.1} parent=0
    #allocation2 [shape = 'u8[8192]{0}', space=vmem, size = 0x2000, scoped, tag = 'output window, operand 0']
    #allocation3 [shape = 's32[2]{0}', space=sflag, size = 0x8, scoped, tag = 'scoped memory for tpu_custom_call.1']
    %7 = vsyncpa [#allocation3], 0
    %s8 = scalar_lea.sflag [#allocation3], 1
    %9 = vsyncpa %s8, 0
    loop: start=0, step=1, limit=4
    $region2: #{tpu_custom_call.1} parent=1 // loop_pre_header
      _
    $region3: #{tpu_custom_call.1} parent=1 // loop_header
      %s11 = sphi 0, %s15
      %p12 = scmp.ge.s32.totalorder %s11, 4
      %s18 = sphi 0, %s30
      %s19 = sphi 0, %s26
      %s20 = sphi 0, %s18
      %s21 = sphi 0, %s19
      %s22 = sphi 0, %s20
      %s23 = sphi 0, %s21
      %s33 = sphi 0, %s35
      %s36 = sphi 0, %s33
      %s37 = sphi 0, %s36
      %s53 = sphi 0, %s37
      %s61 = sphi 0, %s63
      %s64 = sphi 0, %s61
      %s65 = sphi 0, %s64
      %s81 = sphi 0, %s65
      %s89 = sphi 0, %s91
      %s92 = sphi 0, %s89
      %s93 = sphi 0, %s92
      %s109 = sphi 0, %s93
    $region4: #{tpu_custom_call.1} parent=1 // loop_header_branch
      %14 = sbr.rel (%p12) target = $region8
    $region5: #{tpu_custom_call.1} parent=1 // loop_body
      %s16 = ssub.s32 %s11, 1
      %s17 = ssub.s32 %s11, 2
      %s24 = sadd.s32 1, %s19
      %p25 = scmp.ge.s32.totalorder %s24, 1
      %s26 = scalar_select %p25, 0, %s24
      %s27 = sadd.s32 1, %s18
      %s28 = scalar_select %p25, %s27, %s18
      %p29 = scmp.ge.s32.totalorder %s28, 2
      %s30 = scalar_select %p29, 0, %s28
      %s31 = ssub.s32 %s18, %s30
      %p32 = scmp.eq.s32.totalorder %s31, 0
      %s34 = sadd.s32 %s33, 1
      %s35 = scalar_select %p32, %s33, %s34
      %p38 = pneg %p32
      %p39 = scmp.eq.s32.totalorder %s11, 1
      %p40 = por %p38, %p39
      %p41 = scmp.ne.s32.totalorder %s33, %s36
      %p42 = scmp.eq.s32.totalorder %s11, 0
      %p43 = por %p41, %p42
      %p44 = scmp.ne.s32.totalorder %s33, %s36
      %p45 = scmp.eq.s32.totalorder %s16, 1
      %p46 = por %p44, %p45
      %p47 = scmp.ne.s32.totalorder %s36, %s37
      %p48 = scmp.eq.s32.totalorder %s16, 0
      %p49 = por %p47, %p48
      %p50 = scmp.ne.s32.totalorder %s36, %s37
      %p51 = scmp.eq.s32.totalorder %s17, 1
      %p52 = por %p50, %p51
      %p54 = scmp.ne.s32.totalorder %s37, %s53
      %p55 = scmp.eq.s32.totalorder %s17, 0
      %p56 = por %p54, %p55
      %s57 = ssub.s32 %s18, %s30
      %s58 = ssub.s32 %s19, %s26
      %s59 = sor.u32 %s57, %s58
      %p60 = scmp.eq.s32.totalorder %s59, 0
      %s62 = sadd.s32 %s61, 1
      %s63 = scalar_select %p60, %s61, %s62
      %p66 = pneg %p60
      %p67 = scmp.eq.s32.totalorder %s11, 1
      %p68 = por %p66, %p67
      %p69 = scmp.ne.s32.totalorder %s61, %s64
      %p70 = scmp.eq.s32.totalorder %s11, 0
      %p71 = por %p69, %p70
      %p72 = scmp.ne.s32.totalorder %s61, %s64
      %p73 = scmp.eq.s32.totalorder %s16, 1
      %p74 = por %p72, %p73
      %p75 = scmp.ne.s32.totalorder %s64, %s65
      %p76 = scmp.eq.s32.totalorder %s16, 0
      %p77 = por %p75, %p76
      %p78 = scmp.ne.s32.totalorder %s64, %s65
      %p79 = scmp.eq.s32.totalorder %s17, 1
      %p80 = por %p78, %p79
      %p82 = scmp.ne.s32.totalorder %s65, %s81
      %p83 = scmp.eq.s32.totalorder %s17, 0
      %p84 = por %p82, %p83
      %s85 = ssub.s32 %s18, %s30
      %s86 = ssub.s32 %s19, %s26
      %s87 = sor.u32 %s85, %s86
      %p88 = scmp.eq.s32.totalorder %s87, 0
      %s90 = sadd.s32 %s89, 1
      %s91 = scalar_select %p88, %s89, %s90
      %p94 = pneg %p88
      %p95 = scmp.eq.s32.totalorder %s11, 1
      %p96 = por %p94, %p95
      %p97 = scmp.ne.s32.totalorder %s89, %s92
      %p98 = scmp.eq.s32.totalorder %s11, 0
      %p99 = por %p97, %p98
      %p100 = scmp.ne.s32.totalorder %s89, %s92
      %p101 = scmp.eq.s32.totalorder %s16, 1
      %p102 = por %p100, %p101
      %p103 = scmp.ne.s32.totalorder %s92, %s93
      %p104 = scmp.eq.s32.totalorder %s16, 0
      %p105 = por %p103, %p104
      %p106 = scmp.ne.s32.totalorder %s92, %s93
      %p107 = scmp.eq.s32.totalorder %s17, 1
      %p108 = por %p106, %p107
      %p110 = scmp.ne.s32.totalorder %s93, %s109
      %p111 = scmp.eq.s32.totalorder %s17, 0
      %p112 = por %p110, %p111
      %p113 = scmp.le.s32.totalorder 1, %s11
      %p114 = scmp.lt.s32.totalorder %s11, 3
      %p115 = pnand %p113, %p114
      %p116 = pneg %p115
      // Predicated region
      $region9: #{tpu_custom_call.1} parent=5 // pred_check
        _
      $region10: #{tpu_custom_call.1} parent=5 // pred_check_branch
        %118 = sbr.rel (%p115) target = $region12
      $region11: #{tpu_custom_call.1} parent=5 // pred_region
        %s119 = ssub.s32 %s11, 1
      $region12: #{tpu_custom_call.1} parent=5 // pred_fallthru
        _
      %p120 = scmp.lt.s32.totalorder %s11, 2
      // Predicated region
      $region13: #{tpu_custom_call.1} parent=5 // pred_check
        %p121 = pneg %p120
      $region14: #{tpu_custom_call.1} parent=5 // pred_check_branch
        %123 = sbr.rel (%p121) target = $region16
      $region15: #{tpu_custom_call.1} parent=5 // pred_region
        // Predicated region
        $region17: #{tpu_custom_call.1} parent=15 // pred_check
          %p124 = pneg %p43
        $region18: #{tpu_custom_call.1} parent=15 // pred_check_branch
          %126 = sbr.rel (%p124) target = $region20
        $region19: #{tpu_custom_call.1} parent=15 // pred_region
          %p127 = scmp.lt.s32.totalorder %s18, 1
          %s128 = scalar_select %p127, %s18, 1
          %s129 = smul.addr %s128, 8
          %s130 = smul.addr %s129, 8
          %s131 = scalar_lea.vmem %s0, %s130
        $region20: #{tpu_custom_call.1} parent=15 // pred_fallthru
          _
        // Predicated region
        $region21: #{tpu_custom_call.1} parent=15 // pred_check
          %p132 = pneg %p71
        $region22: #{tpu_custom_call.1} parent=15 // pred_check_branch
          %134 = sbr.rel (%p132) target = $region24
        $region23: #{tpu_custom_call.1} parent=15 // pred_region
          %s135 = smul.u32 2, %s19
          %p136 = scmp.lt.s32.totalorder %s18, 1
          %s137 = scalar_select %p136, %s18, 1
          %p138 = scmp.lt.s32.totalorder %s135, 1
          %s139 = scalar_select %p138, %s135, 1
          %s140 = smul.addr %s137, 2
          %s141 = sadd.s32 %s139, %s140
          %s142 = smul.addr %s141, 2
          %s143 = scalar_lea.vmem %s1, %s142
          %s144 = smul.u32 2, %s19
        $region24: #{tpu_custom_call.1} parent=15 // pred_fallthru
          _
      $region16: #{tpu_custom_call.1} parent=5 // pred_fallthru
        _
      %p145 = scmp.le.s32.totalorder 1, %s11
      %p146 = scmp.lt.s32.totalorder %s11, 3
      %p147 = pnand %p145, %p146
      %p148 = pneg %p147
      // Predicated region
      $region25: #{tpu_custom_call.1} parent=5 // pred_check
        _
      $region26: #{tpu_custom_call.1} parent=5 // pred_check_branch
        %150 = sbr.rel (%p147) target = $region28
      $region27: #{tpu_custom_call.1} parent=5 // pred_region
        %s151 = ssub.s32 %s11, 1
        %p152 = scmp.lt.s32.totalorder %s20, 1
        %s153 = scalar_select %p152, %s20, 1
        %s154 = smul.addr %s153, 8
        %s155 = smul.addr %s154, 8
        %s156 = scalar_lea.vmem %s0, %s155
        %p157 = pneg %p49
        %p158 = pneg %p46
        %s159 = smul.u32 2, %s21
        %p160 = scmp.lt.s32.totalorder %s20, 1
        %s161 = scalar_select %p160, %s20, 1
        %p162 = scmp.lt.s32.totalorder %s159, 1
        %s163 = scalar_select %p162, %s159, 1
        %s164 = smul.addr %s161, 2
        %s165 = sadd.s32 %s163, %s164
        %s166 = smul.addr %s165, 2
        %s167 = scalar_lea.vmem %s1, %s166
        %p168 = pneg %p77
        %p169 = pneg %p74
        %p170 = pneg %p105
        %p171 = pneg %p102
        %s172 = sand.u32 %s92, 1
        %s173 = scalar_lea.sflag [#allocation3], %s172
        %s174 = sand.u32 %s92, 1
        %s175 = smul.addr %s174, 8
        %s176 = scalar_lea.vmem [#allocation2], %s175
        %p177 = scmp.lt.s32.totalorder %s20, 1
        %s178 = scalar_select %p177, %s20, 1
        %s179 = smul.addr %s178, 8
        %s180 = smul.addr %s179, 8
        %s181 = scalar_lea.vmem %s0, %s180
        %s182 = smul.u32 2, %s21
        %p183 = scmp.lt.s32.totalorder %s20, 1
        %s184 = scalar_select %p183, %s20, 1
        %p185 = scmp.lt.s32.totalorder %s182, 1
        %s186 = scalar_select %p185, %s182, 1
        %s187 = smul.addr %s184, 2
        %s188 = sadd.s32 %s186, %s187
        %s189 = smul.addr %s188, 2
        %s190 = scalar_lea.vmem %s1, %s189
        %s191 = smul.u32 2, %s21
        %s192 = smul.u32 2, %s21
        %v193 = vld [vmem:[%s181] sm:$0xff]
        %v194 = vld [vmem:[%s181 + $0x8] sm:$0xff]
        %v195 = vld [vmem:[%s181 + $0x10] sm:$0xff]
        %v196 = vld [vmem:[%s181 + $0x18] sm:$0xff]
        %v197 = vld [vmem:[%s181 + $0x20] sm:$0xff]
        %v198 = vld [vmem:[%s181 + $0x28] sm:$0xff]
        %v199 = vld [vmem:[%s181 + $0x30] sm:$0xff]
        %v200 = vld [vmem:[%s181 + $0x38] sm:$0xff]
        %v201 = vld [vmem:[%s190] sm:$0xf]
        %v202 = vadd.f32 %v201, 1.0
        %v203 = vmul.f32 %v202, 8.0
        %v204 = vsub.f32 %v203, 0.5
        %v205 = vfloor.f32 %v204
        %v206 = vsub.f32 %v204, %v205
        %v207 = vcvt.f32.s32.to.zero.pseudo %v205
        %v208 = vadd.s32 %v207, 1
        %vm209 = vcmp.ge.s32.totalorder %v207, 0
        %vm210 = vcmp.lt.s32.totalorder %v207, 16
        %vm211 = vmand %vm209, %vm210
        %v212 = vsub.f32 1.0, %v206
        %v213 = vsel %vm211, %v212, 0.0
        %vm214 = vcmp.ge.s32.totalorder %v208, 0
        %vm215 = vcmp.lt.s32.totalorder %v208, 16
        %vm216 = vmand %vm214, %vm215
        %v217 = vsel %vm216, %v206, 0.0
        %v218 = vlaneseq
        %v219 = vshrl.u32 %v218, 7
        %v220 = vadd.s32 %v219, 8
        %v221 = vlaneseq
        %v222 = vshrl.u32 %v221, 7
        %v223 = vsub.s32 0, %v222
        %v224 = vrot.slane %v207, %v223
        %v225 = vlaneseq
        %v226 = vshrl.u32 %v225, 7
        %v227 = vsub.s32 2, %v226
        %v228 = vrot.slane %v207, %v227
        %v229 = vlaneseq
        %v230 = vshrl.u32 %v229, 7
        %v231 = vsub.s32 0, %v230
        %v232 = vrot.slane %v224, %v231
        %v233 = vlaneseq
        %v234 = vshrl.u32 %v233, 7
        %v235 = vsub.s32 0, %v234
        %v236 = vrot.slane %v228, %v235
        %v237 = vsub.s32 %v219, %v232
        %v238 = vsub.s32 %v219, %v236
        %v239 = vsub.s32 %v220, %v232
        %v240 = vsub.s32 %v220, %v236
        %vm241 = vcmp.eq.s32.totalorder %v237, 0
        %vm242 = vcmp.eq.s32.totalorder %v238, 0
        %vm243 = vcmp.eq.s32.totalorder %v239, 0
        %vm244 = vcmp.eq.s32.totalorder %v240, 0
        %vm245 = vcmp.eq.s32.totalorder %v237, 1
        %vm246 = vcmp.eq.s32.totalorder %v238, 1
        %vm247 = vcmp.eq.s32.totalorder %v239, 1
        %vm248 = vcmp.eq.s32.totalorder %v240, 1
        %v250 = vlaneseq
        %v251 = vshrl.u32 %v250, 7
        %v252 = vsub.s32 0, %v251
        %v253 = vrot.slane %v217, %v252
        %v254 = vlaneseq
        %v255 = vshrl.u32 %v254, 7
        %v256 = vsub.s32 2, %v255
        %v257 = vrot.slane %v217, %v256
        %v260 = vlaneseq
        %v261 = vshrl.u32 %v260, 7
        %v262 = vsub.s32 0, %v261
        %v263 = vrot.slane %v253, %v262
        %v264 = vlaneseq
        %v265 = vshrl.u32 %v264, 7
        %v266 = vsub.s32 0, %v265
        %v267 = vrot.slane %v257, %v266
        %v268 = vsel %vm245, %v263, 0.0
        %v269 = vsel %vm246, %v267, 0.0
        %v270 = vsel %vm247, %v263, 0.0
        %v271 = vsel %vm248, %v267, 0.0
        %v273 = vlaneseq
        %v274 = vshrl.u32 %v273, 7
        %v275 = vsub.s32 0, %v274
        %v276 = vrot.slane %v213, %v275
        %v277 = vlaneseq
        %v278 = vshrl.u32 %v277, 7
        %v279 = vsub.s32 2, %v278
        %v280 = vrot.slane %v213, %v279
        %v283 = vlaneseq
        %v284 = vshrl.u32 %v283, 7
        %v285 = vsub.s32 0, %v284
        %v286 = vrot.slane %v276, %v285
        %v287 = vlaneseq
        %v288 = vshrl.u32 %v287, 7
        %v289 = vsub.s32 0, %v288
        %v290 = vrot.slane %v280, %v289
        %v291 = vsel %vm241, %v286, %v268
        %v292 = vsel %vm242, %v290, %v269
        %v293 = vsel %vm243, %v286, %v270
        %v294 = vsel %vm244, %v290, %v271
        %v295 = vlaneseq
        %v296 = vshrl.u32 %v295, 7
        %v297 = vsub.s32 1, %v296
        %v298 = vrot.slane %v207, %v297
        %v299 = vlaneseq
        %v300 = vshrl.u32 %v299, 7
        %v301 = vsub.s32 3, %v300
        %v302 = vrot.slane %v207, %v301
        %v303 = vlaneseq
        %v304 = vshrl.u32 %v303, 7
        %v305 = vsub.s32 1, %v304
        %v306 = vrot.slane %v298, %v305
        %v307 = vlaneseq
        %v308 = vshrl.u32 %v307, 7
        %v309 = vsub.s32 1, %v308
        %v310 = vrot.slane %v302, %v309
        %v311 = vsub.s32 %v219, %v306
        %v312 = vsub.s32 %v219, %v310
        %v313 = vsub.s32 %v220, %v306
        %v314 = vsub.s32 %v220, %v310
        %vm315 = vcmp.eq.s32.totalorder %v311, 0
        %vm316 = vcmp.eq.s32.totalorder %v312, 0
        %vm317 = vcmp.eq.s32.totalorder %v313, 0
        %vm318 = vcmp.eq.s32.totalorder %v314, 0
        %vm319 = vcmp.eq.s32.totalorder %v311, 1
        %vm320 = vcmp.eq.s32.totalorder %v312, 1
        %vm321 = vcmp.eq.s32.totalorder %v313, 1
        %vm322 = vcmp.eq.s32.totalorder %v314, 1
        %v323 = vlaneseq
        %v324 = vshrl.u32 %v323, 7
        %v325 = vsub.s32 1, %v324
        %v326 = vrot.slane %v217, %v325
        %v327 = vlaneseq
        %v328 = vshrl.u32 %v327, 7
        %v329 = vsub.s32 3, %v328
        %v330 = vrot.slane %v217, %v329
        %v333 = vlaneseq
        %v334 = vshrl.u32 %v333, 7
        %v335 = vsub.s32 1, %v334
        %v336 = vrot.slane %v326, %v335
        %v337 = vlaneseq
        %v338 = vshrl.u32 %v337, 7
        %v339 = vsub.s32 1, %v338
        %v340 = vrot.slane %v330, %v339
        %v341 = vsel %vm319, %v336, 0.0
        %v342 = vsel %vm320, %v340, 0.0
        %v343 = vsel %vm321, %v336, 0.0
        %v344 = vsel %vm322, %v340, 0.0
        %v345 = vlaneseq
        %v346 = vshrl.u32 %v345, 7
        %v347 = vsub.s32 1, %v346
        %v348 = vrot.slane %v213, %v347
        %v349 = vlaneseq
        %v350 = vshrl.u32 %v349, 7
        %v351 = vsub.s32 3, %v350
        %v352 = vrot.slane %v213, %v351
        %v355 = vlaneseq
        %v356 = vshrl.u32 %v355, 7
        %v357 = vsub.s32 1, %v356
        %v358 = vrot.slane %v348, %v357
        %v359 = vlaneseq
        %v360 = vshrl.u32 %v359, 7
        %v361 = vsub.s32 1, %v360
        %v362 = vrot.slane %v352, %v361
        %v363 = vsel %vm315, %v358, %v341
        %v364 = vsel %vm316, %v362, %v342
        %v365 = vsel %vm317, %v358, %v343
        %v366 = vsel %vm318, %v362, %v344
        %vm367 = vcmask 130048
        %v369 = vsel %vm367, %v193, 0
        %v372 = vsel %vm367, %v194, 0
        %v375 = vsel %vm367, %v195, 0
        %v378 = vsel %vm367, %v196, 0
        %v381 = vsel %vm367, %v197, 0
        %v384 = vsel %vm367, %v198, 0
        %v387 = vsel %vm367, %v199, 0
        %v390 = vsel %vm367, %v200, 0
        %v392 = vand.u32 %v292, 4294901760
        %393 = vmatprep.subr.mxu0 %v392
        %v394 = vand.u32 %v291, 4294901760
        %395 = vmatpush1.msra.mxu0 %v394
        %v396 = vand.u32 %v294, 4294901760
        %397 = vmatprep.subr.mxu0 %v396
        %v398 = vand.u32 %v293, 4294901760
        %399 = vmatpush1.msra.mxu0 %v398
        %400 = vmatprep.subr.mxu0 0.0
        %401 = vmatpush1.msra.mxu0 0.0
        %402 = vmatprep.subr.mxu0 0.0
        %403 = vmatpush1.msra.mxu0 0.0
        %404 = vmatprep.subr.mxu0 0.0
        %405 = vmatpush1.msra.mxu0 0.0
        %406 = vmatprep.subr.mxu0 0.0
        %407 = vmatpush1.msra.mxu0 0.0
        %408 = vmatprep.subr.mxu0 0.0
        %409 = vmatpush1.msra.mxu0 0.0
        %410 = vmatprep.subr.mxu0 0.0
        %411 = vmatpush1.msra.mxu0 0.0
        %412 = vmatprep.subr.mxu0 0.0
        %413 = vmatpush1.msra.mxu0 0.0
        %414 = vmatprep.subr.mxu0 0.0
        %415 = vmatpush1.msra.mxu0 0.0
        %416 = vmatprep.subr.mxu0 0.0
        %417 = vmatpush1.msra.mxu0 0.0
        %418 = vmatprep.subr.mxu0 0.0
        %419 = vmatpush1.msra.mxu0 0.0
        %420 = vmatprep.subr.mxu0 0.0
        %421 = vmatpush1.msra.mxu0 0.0
        %422 = vmatprep.subr.mxu0 0.0
        %423 = vmatpush1.msra.mxu0 0.0
        %424 = vmatprep.subr.mxu0 0.0
        %425 = vmatpush1.msra.mxu0 0.0
        %426 = vmatprep.subr.mxu0 0.0
        %427 = vmatpush1.msra.mxu0 0.0
        %428 = vmatprep.subr.mxu0 0.0
        %429 = vmatpush1.msra.mxu0 0.0
        %430 = vmatprep.subr.mxu0 0.0
        %431 = vmatpush1.msra.mxu0 0.0
        %432 = vmatprep.subr.mxu0 0.0
        %433 = vmatpush1.msra.mxu0 0.0
        %434 = vmatprep.subr.mxu0 0.0
        %435 = vmatpush1.msra.mxu0 0.0
        %436 = vmatprep.subr.mxu0 0.0
        %437 = vmatpush1.msra.mxu0 0.0
        %438 = vmatprep.subr.mxu0 0.0
        %439 = vmatpush1.msra.mxu0 0.0
        %440 = vmatprep.subr.mxu0 0.0
        %441 = vmatpush1.msra.mxu0 0.0
        %442 = vmatprep.subr.mxu0 0.0
        %443 = vmatpush1.msra.mxu0 0.0
        %444 = vmatprep.subr.mxu0 0.0
        %445 = vmatpush1.msra.mxu0 0.0
        %446 = vmatprep.subr.mxu0 0.0
        %447 = vmatpush1.msra.mxu0 0.0
        %448 = vmatprep.subr.mxu0 0.0
        %449 = vmatpush1.msra.mxu0 0.0
        %450 = vmatprep.subr.mxu0 0.0
        %451 = vmatpush1.msra.mxu0 0.0
        %452 = vmatprep.subr.mxu0 0.0
        %453 = vmatpush1.msra.mxu0 0.0
        %454 = vmatprep.subr.mxu0 0.0
        %455 = vmatpush1.msra.mxu0 0.0
        %456 = vmatprep.subr.mxu0 0.0
        %457 = vmatpush1.msra.mxu0 0.0
        %458 = vmatprep.subr.mxu0 0.0
        %459 = vmatpush1.msra.mxu0 0.0
        %460 = vmatprep.mubr.f32.mxu0 0.0
        %v461 = vand.u32 %v369, 4294901760
        %v462 = vsub.f32 %v369, %v461
        %v463 = vand.u32 %v462, 4294901760
        %v464 = vsub.f32 %v462, %v463
        %v465 = vand.u32 %v464, 4294901760
        %466 = vmatmul.mubr.f32.gmra.mrb[0].mxu0 %v465
        %v467 = vpop.f32.mrb[0].mxu0
        %v468 = vadd.f32 0.0, %v467
        %v469 = vpop.f32.mrb[0].mxu0
        %v470 = vadd.f32 0.0, %v469
        %471 = vmatprep.mubr.f32.mxu0 0.0
        %v472 = vand.u32 %v372, 4294901760
        %v473 = vsub.f32 %v372, %v472
        %v474 = vand.u32 %v473, 4294901760
        %v475 = vsub.f32 %v473, %v474
        %v476 = vand.u32 %v475, 4294901760
        %477 = vmatmul.mubr.f32.gmra.mrb[0].mxu0 %v476
        %v478 = vpop.f32.mrb[0].mxu0
        %v479 = vadd.f32 0.0, %v478
        %v480 = vpop.f32.mrb[0].mxu0
        %v481 = vadd.f32 0.0, %v480
        %482 = vmatprep.mubr.f32.mxu0 0.0
        %v483 = vand.u32 %v375, 4294901760
        %v484 = vsub.f32 %v375, %v483
        %v485 = vand.u32 %v484, 4294901760
        %v486 = vsub.f32 %v484, %v485
        %v487 = vand.u32 %v486, 4294901760
        %488 = vmatmul.mubr.f32.gmra.mrb[0].mxu0 %v487
        %v489 = vpop.f32.mrb[0].mxu0
        %v490 = vadd.f32 0.0, %v489
        %v491 = vpop.f32.mrb[0].mxu0
        %v492 = vadd.f32 0.0, %v491
        %493 = vmatprep.mubr.f32.mxu0 0.0
        %v494 = vand.u32 %v378, 4294901760
        %v495 = vsub.f32 %v378, %v494
        %v496 = vand.u32 %v495, 4294901760
        %v497 = vsub.f32 %v495, %v496
        %v498 = vand.u32 %v497, 4294901760
        %499 = vmatmul.mubr.f32.gmra.mrb[0].mxu0 %v498
        %v500 = vpop.f32.mrb[0].mxu0
        %v501 = vadd.f32 0.0, %v500
        %v502 = vpop.f32.mrb[0].mxu0
        %v503 = vadd.f32 0.0, %v502
        %504 = vmatprep.mubr.f32.mxu0 0.0
        %v505 = vand.u32 %v381, 4294901760
        %v506 = vsub.f32 %v381, %v505
        %v507 = vand.u32 %v506, 4294901760
        %v508 = vsub.f32 %v506, %v507
        %v509 = vand.u32 %v508, 4294901760
        %510 = vmatmul.mubr.f32.gmra.mrb[0].mxu0 %v509
        %v511 = vpop.f32.mrb[0].mxu0
        %v512 = vadd.f32 0.0, %v511
        %v513 = vpop.f32.mrb[0].mxu0
        %v514 = vadd.f32 0.0, %v513
        %515 = vmatprep.mubr.f32.mxu0 0.0
        %v516 = vand.u32 %v384, 4294901760
        %v517 = vsub.f32 %v384, %v516
        %v518 = vand.u32 %v517, 4294901760
        %v519 = vsub.f32 %v517, %v518
        %v520 = vand.u32 %v519, 4294901760
        %521 = vmatmul.mubr.f32.gmra.mrb[0].mxu0 %v520
        %v522 = vpop.f32.mrb[0].mxu0
        %v523 = vadd.f32 0.0, %v522
        %v524 = vpop.f32.mrb[0].mxu0
        %v525 = vadd.f32 0.0, %v524
        %526 = vmatprep.mubr.f32.mxu0 0.0
        %v527 = vand.u32 %v387, 4294901760
        %v528 = vsub.f32 %v387, %v527
        %v529 = vand.u32 %v528, 4294901760
        %v530 = vsub.f32 %v528, %v529
        %v531 = vand.u32 %v530, 4294901760
        %532 = vmatmul.mubr.f32.gmra.mrb[0].mxu0 %v531
        %v533 = vpop.f32.mrb[0].mxu0
        %v534 = vadd.f32 0.0, %v533
        %v535 = vpop.f32.mrb[0].mxu0
        %v536 = vadd.f32 0.0, %v535
        %537 = vmatprep.mubr.f32.mxu0 0.0
        %v538 = vand.u32 %v390, 4294901760
        %v539 = vsub.f32 %v390, %v538
        %v540 = vand.u32 %v539, 4294901760
        %v541 = vsub.f32 %v539, %v540
        %v542 = vand.u32 %v541, 4294901760
        %543 = vmatmul.mubr.f32.gmra.mrb[0].mxu0 %v542
        %v544 = vpop.f32.mrb[0].mxu0
        %v545 = vadd.f32 0.0, %v544
        %v546 = vpop.f32.mrb[0].mxu0
        %v547 = vadd.f32 0.0, %v546
        %548 = vdwg.mxu0
        %v549 = vand.u32 %v292, 4294901760
        %v550 = vsub.f32 %v292, %v549
        %v551 = vand.u32 %v550, 4294901760
        %v552 = vsub.f32 %v550, %v551
        %v553 = vand.u32 %v552, 4294901760
        %554 = vmatprep.subr.mxu0 %v553
        %v555 = vand.u32 %v291, 4294901760
        %v556 = vsub.f32 %v291, %v555
        %v557 = vand.u32 %v556, 4294901760
        %v558 = vsub.f32 %v556, %v557
        %v559 = vand.u32 %v558, 4294901760
        %560 = vmatpush1.msra.mxu0 %v559
        %v561 = vand.u32 %v294, 4294901760
        %v562 = vsub.f32 %v294, %v561
        %v563 = vand.u32 %v562, 4294901760
        %v564 = vsub.f32 %v562, %v563
        %v565 = vand.u32 %v564, 4294901760
        %566 = vmatprep.subr.mxu0 %v565
        %v567 = vand.u32 %v293, 4294901760
        %v568 = vsub.f32 %v293, %v567
        %v569 = vand.u32 %v568, 4294901760
        %v570 = vsub.f32 %v568, %v569
        %v571 = vand.u32 %v570, 4294901760
        %572 = vmatpush1.msra.mxu0 %v571
        %573 = vmatprep.subr.mxu0 0.0
        %574 = vmatpush1.msra.mxu0 0.0
        %575 = vmatprep.subr.mxu0 0.0
        %576 = vmatpush1.msra.mxu0 0.0
        %577 = vmatprep.subr.mxu0 0.0
        %578 = vmatpush1.msra.mxu0 0.0
        %579 = vmatprep.subr.mxu0 0.0
        %580 = vmatpush1.msra.mxu0 0.0
        %581 = vmatprep.subr.mxu0 0.0
        %582 = vmatpush1.msra.mxu0 0.0
        %583 = vmatprep.subr.mxu0 0.0
        %584 = vmatpush1.msra.mxu0 0.0
        %585 = vmatprep.subr.mxu0 0.0
        %586 = vmatpush1.msra.mxu0 0.0
        %587 = vmatprep.subr.mxu0 0.0
        %588 = vmatpush1.msra.mxu0 0.0
        %589 = vmatprep.subr.mxu0 0.0
        %590 = vmatpush1.msra.mxu0 0.0
        %591 = vmatprep.subr.mxu0 0.0
        %592 = vmatpush1.msra.mxu0 0.0
        %593 = vmatprep.subr.mxu0 0.0
        %594 = vmatpush1.msra.mxu0 0.0
        %595 = vmatprep.subr.mxu0 0.0
        %596 = vmatpush1.msra.mxu0 0.0
        %597 = vmatprep.subr.mxu0 0.0
        %598 = vmatpush1.msra.mxu0 0.0
        %599 = vmatprep.subr.mxu0 0.0
        %600 = vmatpush1.msra.mxu0 0.0
        %601 = vmatprep.subr.mxu0 0.0
        %602 = vmatpush1.msra.mxu0 0.0
        %603 = vmatprep.subr.mxu0 0.0
        %604 = vmatpush1.msra.mxu0 0.0
        %605 = vmatprep.subr.mxu0 0.0
        %606 = vmatpush1.msra.mxu0 0.0
        %607 = vmatprep.subr.mxu0 0.0
        %608 = vmatpush1.msra.mxu0 0.0
        %609 = vmatprep.subr.mxu0 0.0
        %610 = vmatpush1.msra.mxu0 0.0
        %611 = vmatprep.subr.mxu0 0.0
        %612 = vmatpush1.msra.mxu0 0.0
        %613 = vmatprep.subr.mxu0 0.0
        %614 = vmatpush1.msra.mxu0 0.0
        %615 = vmatprep.subr.mxu0 0.0
        %616 = vmatpush1.msra.mxu0 0.0
        %617 = vmatprep.subr.mxu0 0.0
        %618 = vmatpush1.msra.mxu0 0.0
        %619 = vmatprep.subr.mxu0 0.0
        %620 = vmatpush1.msra.mxu0 0.0
        %621 = vmatprep.subr.mxu0 0.0
        %622 = vmatpush1.msra.mxu0 0.0
        %623 = vmatprep.subr.mxu0 0.0
        %624 = vmatpush1.msra.mxu0 0.0
        %625 = vmatprep.subr.mxu0 0.0
        %626 = vmatpush1.msra.mxu0 0.0
        %627 = vmatprep.subr.mxu0 0.0
        %628 = vmatpush1.msra.mxu0 0.0
        %629 = vmatprep.subr.mxu0 0.0
        %630 = vmatpush1.msra.mxu0 0.0
        %631 = vmatprep.subr.mxu0 0.0
        %632 = vmatpush1.msra.mxu0 0.0
        %633 = vmatprep.mubr.f32.mxu0 0.0
        %v634 = vand.u32 %v369, 4294901760
        %635 = vmatmul.mubr.f32.gmra.mrb[0].mxu0 %v634
        %v636 = vpop.f32.mrb[0].mxu0
        %v637 = vadd.f32 %v468, %v636
        %v638 = vpop.f32.mrb[0].mxu0
        %v639 = vadd.f32 %v470, %v638
        %640 = vmatprep.mubr.f32.mxu0 0.0
        %v641 = vand.u32 %v372, 4294901760
        %642 = vmatmul.mubr.f32.gmra.mrb[0].mxu0 %v641
        %v643 = vpop.f32.mrb[0].mxu0
        %v644 = vadd.f32 %v479, %v643
        %v645 = vpop.f32.mrb[0].mxu0
        %v646 = vadd.f32 %v481, %v645
        %647 = vmatprep.mubr.f32.mxu0 0.0
        %v648 = vand.u32 %v375, 4294901760
        %649 = vmatmul.mubr.f32.gmra.mrb[0].mxu0 %v648
        %v650 = vpop.f32.mrb[0].mxu0
        %v651 = vadd.f32 %v490, %v650
        %v652 = vpop.f32.mrb[0].mxu0
        %v653 = vadd.f32 %v492, %v652
        %654 = vmatprep.mubr.f32.mxu0 0.0
        %v655 = vand.u32 %v378, 4294901760
        %656 = vmatmul.mubr.f32.gmra.mrb[0].mxu0 %v655
        %v657 = vpop.f32.mrb[0].mxu0
        %v658 = vadd.f32 %v501, %v657
        %v659 = vpop.f32.mrb[0].mxu0
        %v660 = vadd.f32 %v503, %v659
        %661 = vmatprep.mubr.f32.mxu0 0.0
        %v662 = vand.u32 %v381, 4294901760
        %663 = vmatmul.mubr.f32.gmra.mrb[0].mxu0 %v662
        %v664 = vpop.f32.mrb[0].mxu0
        %v665 = vadd.f32 %v512, %v664
        %v666 = vpop.f32.mrb[0].mxu0
        %v667 = vadd.f32 %v514, %v666
        %668 = vmatprep.mubr.f32.mxu0 0.0
        %v669 = vand.u32 %v384, 4294901760
        %670 = vmatmul.mubr.f32.gmra.mrb[0].mxu0 %v669
        %v671 = vpop.f32.mrb[0].mxu0
        %v672 = vadd.f32 %v523, %v671
        %v673 = vpop.f32.mrb[0].mxu0
        %v674 = vadd.f32 %v525, %v673
        %675 = vmatprep.mubr.f32.mxu0 0.0
        %v676 = vand.u32 %v387, 4294901760
        %677 = vmatmul.mubr.f32.gmra.mrb[0].mxu0 %v676
        %v678 = vpop.f32.mrb[0].mxu0
        %v679 = vadd.f32 %v534, %v678
        %v680 = vpop.f32.mrb[0].mxu0
        %v681 = vadd.f32 %v536, %v680
        %682 = vmatprep.mubr.f32.mxu0 0.0
        %v683 = vand.u32 %v390, 4294901760
        %684 = vmatmul.mubr.f32.gmra.mrb[0].mxu0 %v683
        %v685 = vpop.f32.mrb[0].mxu0
        %v686 = vadd.f32 %v545, %v685
        %v687 = vpop.f32.mrb[0].mxu0
        %v688 = vadd.f32 %v547, %v687
        %689 = vdwg.mxu0
        %v690 = vand.u32 %v292, 4294901760
        %v691 = vsub.f32 %v292, %v690
        %692 = vmatprep.subr.mxu0 %v691
        %v693 = vand.u32 %v291, 4294901760
        %v694 = vsub.f32 %v291, %v693
        %695 = vmatpush1.msra.mxu0 %v694
        %v696 = vand.u32 %v294, 4294901760
        %v697 = vsub.f32 %v294, %v696
        %698 = vmatprep.subr.mxu0 %v697
        %v699 = vand.u32 %v293, 4294901760
        %v700 = vsub.f32 %v293, %v699
        %701 = vmatpush1.msra.mxu0 %v700
        %702 = vmatprep.subr.mxu0 0.0
        %703 = vmatpush1.msra.mxu0 0.0
        %704 = vmatprep.subr.mxu0 0.0
        %705 = vmatpush1.msra.mxu0 0.0
        %706 = vmatprep.subr.mxu0 0.0
        %707 = vmatpush1.msra.mxu0 0.0
        %708 = vmatprep.subr.mxu0 0.0
        %709 = vmatpush1.msra.mxu0 0.0
        %710 = vmatprep.subr.mxu0 0.0
        %711 = vmatpush1.msra.mxu0 0.0
        %712 = vmatprep.subr.mxu0 0.0
        %713 = vmatpush1.msra.mxu0 0.0
        %714 = vmatprep.subr.mxu0 0.0
        %715 = vmatpush1.msra.mxu0 0.0
        %716 = vmatprep.subr.mxu0 0.0
        %717 = vmatpush1.msra.mxu0 0.0
        %718 = vmatprep.subr.mxu0 0.0
        %719 = vmatpush1.msra.mxu0 0.0
        %720 = vmatprep.subr.mxu0 0.0
        %721 = vmatpush1.msra.mxu0 0.0
        %722 = vmatprep.subr.mxu0 0.0
        %723 = vmatpush1.msra.mxu0 0.0
        %724 = vmatprep.subr.mxu0 0.0
        %725 = vmatpush1.msra.mxu0 0.0
        %726 = vmatprep.subr.mxu0 0.0
        %727 = vmatpush1.msra.mxu0 0.0
        %728 = vmatprep.subr.mxu0 0.0
        %729 = vmatpush1.msra.mxu0 0.0
        %730 = vmatprep.subr.mxu0 0.0
        %731 = vmatpush1.msra.mxu0 0.0
        %732 = vmatprep.subr.mxu0 0.0
        %733 = vmatpush1.msra.mxu0 0.0
        %734 = vmatprep.subr.mxu0 0.0
        %735 = vmatpush1.msra.mxu0 0.0
        %736 = vmatprep.subr.mxu0 0.0
        %737 = vmatpush1.msra.mxu0 0.0
        %738 = vmatprep.subr.mxu0 0.0
        %739 = vmatpush1.msra.mxu0 0.0
        %740 = vmatprep.subr.mxu0 0.0
        %741 = vmatpush1.msra.mxu0 0.0
        %742 = vmatprep.subr.mxu0 0.0
        %743 = vmatpush1.msra.mxu0 0.0
        %744 = vmatprep.subr.mxu0 0.0
        %745 = vmatpush1.msra.mxu0 0.0
        %746 = vmatprep.subr.mxu0 0.0
        %747 = vmatpush1.msra.mxu0 0.0
        %748 = vmatprep.subr.mxu0 0.0
        %749 = vmatpush1.msra.mxu0 0.0
        %750 = vmatprep.subr.mxu0 0.0
        %751 = vmatpush1.msra.mxu0 0.0
        %752 = vmatprep.subr.mxu0 0.0
        %753 = vmatpush1.msra.mxu0 0.0
        %754 = vmatprep.subr.mxu0 0.0
        %755 = vmatpush1.msra.mxu0 0.0
        %756 = vmatprep.subr.mxu0 0.0
        %757 = vmatpush1.msra.mxu0 0.0
        %758 = vmatprep.subr.mxu0 0.0
        %759 = vmatpush1.msra.mxu0 0.0
        %760 = vmatprep.subr.mxu0 0.0
        %761 = vmatpush1.msra.mxu0 0.0
        %762 = vmatprep.mubr.f32.mxu0 0.0
        %v763 = vand.u32 %v369, 4294901760
        %v764 = vsub.f32 %v369, %v763
        %765 = vmatmul.mubr.f32.gmra.mrb[0].mxu0 %v764
        %v766 = vpop.f32.mrb[0].mxu0
        %v767 = vadd.f32 %v637, %v766
        %v768 = vpop.f32.mrb[0].mxu0
        %v769 = vadd.f32 %v639, %v768
        %770 = vmatprep.mubr.f32.mxu0 0.0
        %v771 = vand.u32 %v372, 4294901760
        %v772 = vsub.f32 %v372, %v771
        %773 = vmatmul.mubr.f32.gmra.mrb[0].mxu0 %v772
        %v774 = vpop.f32.mrb[0].mxu0
        %v775 = vadd.f32 %v644, %v774
        %v776 = vpop.f32.mrb[0].mxu0
        %v777 = vadd.f32 %v646, %v776
        %778 = vmatprep.mubr.f32.mxu0 0.0
        %v779 = vand.u32 %v375, 4294901760
        %v780 = vsub.f32 %v375, %v779
        %781 = vmatmul.mubr.f32.gmra.mrb[0].mxu0 %v780
        %v782 = vpop.f32.mrb[0].mxu0
        %v783 = vadd.f32 %v651, %v782
        %v784 = vpop.f32.mrb[0].mxu0
        %v785 = vadd.f32 %v653, %v784
        %786 = vmatprep.mubr.f32.mxu0 0.0
        %v787 = vand.u32 %v378, 4294901760
        %v788 = vsub.f32 %v378, %v787
        %789 = vmatmul.mubr.f32.gmra.mrb[0].mxu0 %v788
        %v790 = vpop.f32.mrb[0].mxu0
        %v791 = vadd.f32 %v658, %v790
        %v792 = vpop.f32.mrb[0].mxu0
        %v793 = vadd.f32 %v660, %v792
        %794 = vmatprep.mubr.f32.mxu0 0.0
        %v795 = vand.u32 %v381, 4294901760
        %v796 = vsub.f32 %v381, %v795
        %797 = vmatmul.mubr.f32.gmra.mrb[0].mxu0 %v796
        %v798 = vpop.f32.mrb[0].mxu0
        %v799 = vadd.f32 %v665, %v798
        %v800 = vpop.f32.mrb[0].mxu0
        %v801 = vadd.f32 %v667, %v800
        %802 = vmatprep.mubr.f32.mxu0 0.0
        %v803 = vand.u32 %v384, 4294901760
        %v804 = vsub.f32 %v384, %v803
        %805 = vmatmul.mubr.f32.gmra.mrb[0].mxu0 %v804
        %v806 = vpop.f32.mrb[0].mxu0
        %v807 = vadd.f32 %v672, %v806
        %v808 = vpop.f32.mrb[0].mxu0
        %v809 = vadd.f32 %v674, %v808
        %810 = vmatprep.mubr.f32.mxu0 0.0
        %v811 = vand.u32 %v387, 4294901760
        %v812 = vsub.f32 %v387, %v811
        %813 = vmatmul.mubr.f32.gmra.mrb[0].mxu0 %v812
        %v814 = vpop.f32.mrb[0].mxu0
        %v815 = vadd.f32 %v679, %v814
        %v816 = vpop.f32.mrb[0].mxu0
        %v817 = vadd.f32 %v681, %v816
        %818 = vmatprep.mubr.f32.mxu0 0.0
        %v819 = vand.u32 %v390, 4294901760
        %v820 = vsub.f32 %v390, %v819
        %821 = vmatmul.mubr.f32.gmra.mrb[0].mxu0 %v820
        %v822 = vpop.f32.mrb[0].mxu0
        %v823 = vadd.f32 %v686, %v822
        %v824 = vpop.f32.mrb[0].mxu0
        %v825 = vadd.f32 %v688, %v824
        %826 = vdwg.mxu0
        %v827 = vand.u32 %v292, 4294901760
        %828 = vmatprep.subr.mxu0 %v827
        %v829 = vand.u32 %v291, 4294901760
        %830 = vmatpush1.msra.mxu0 %v829
        %v831 = vand.u32 %v294, 4294901760
        %832 = vmatprep.subr.mxu0 %v831
        %v833 = vand.u32 %v293, 4294901760
        %834 = vmatpush1.msra.mxu0 %v833
        %835 = vmatprep.subr.mxu0 0.0
        %836 = vmatpush1.msra.mxu0 0.0
        %837 = vmatprep.subr.mxu0 0.0
        %838 = vmatpush1.msra.mxu0 0.0
        %839 = vmatprep.subr.mxu0 0.0
        %840 = vmatpush1.msra.mxu0 0.0
        %841 = vmatprep.subr.mxu0 0.0
        %842 = vmatpush1.msra.mxu0 0.0
        %843 = vmatprep.subr.mxu0 0.0
        %844 = vmatpush1.msra.mxu0 0.0
        %845 = vmatprep.subr.mxu0 0.0
        %846 = vmatpush1.msra.mxu0 0.0
        %847 = vmatprep.subr.mxu0 0.0
        %848 = vmatpush1.msra.mxu0 0.0
        %849 = vmatprep.subr.mxu0 0.0
        %850 = vmatpush1.msra.mxu0 0.0
        %851 = vmatprep.subr.mxu0 0.0
        %852 = vmatpush1.msra.mxu0 0.0
        %853 = vmatprep.subr.mxu0 0.0
        %854 = vmatpush1.msra.mxu0 0.0
        %855 = vmatprep.subr.mxu0 0.0
        %856 = vmatpush1.msra.mxu0 0.0
        %857 = vmatprep.subr.mxu0 0.0
        %858 = vmatpush1.msra.mxu0 0.0
        %859 = vmatprep.subr.mxu0 0.0
        %860 = vmatpush1.msra.mxu0 0.0
        %861 = vmatprep.subr.mxu0 0.0
        %862 = vmatpush1.msra.mxu0 0.0
        %863 = vmatprep.subr.mxu0 0.0
        %864 = vmatpush1.msra.mxu0 0.0
        %865 = vmatprep.subr.mxu0 0.0
        %866 = vmatpush1.msra.mxu0 0.0
        %867 = vmatprep.subr.mxu0 0.0
        %868 = vmatpush1.msra.mxu0 0.0
        %869 = vmatprep.subr.mxu0 0.0
        %870 = vmatpush1.msra.mxu0 0.0
        %871 = vmatprep.subr.mxu0 0.0
        %872 = vmatpush1.msra.mxu0 0.0
        %873 = vmatprep.subr.mxu0 0.0
        %874 = vmatpush1.msra.mxu0 0.0
        %875 = vmatprep.subr.mxu0 0.0
        %876 = vmatpush1.msra.mxu0 0.0
        %877 = vmatprep.subr.mxu0 0.0
        %878 = vmatpush1.msra.mxu0 0.0
        %879 = vmatprep.subr.mxu0 0.0
        %880 = vmatpush1.msra.mxu0 0.0
        %881 = vmatprep.subr.mxu0 0.0
        %882 = vmatpush1.msra.mxu0 0.0
        %883 = vmatprep.subr.mxu0 0.0
        %884 = vmatpush1.msra.mxu0 0.0
        %885 = vmatprep.subr.mxu0 0.0
        %886 = vmatpush1.msra.mxu0 0.0
        %887 = vmatprep.subr.mxu0 0.0
        %888 = vmatpush1.msra.mxu0 0.0
        %889 = vmatprep.subr.mxu0 0.0
        %890 = vmatpush1.msra.mxu0 0.0
        %891 = vmatprep.subr.mxu0 0.0
        %892 = vmatpush1.msra.mxu0 0.0
        %893 = vmatprep.subr.mxu0 0.0
        %894 = vmatpush1.msra.mxu0 0.0
        %895 = vmatprep.mubr.f32.mxu0 0.0
        %v896 = vand.u32 %v369, 4294901760
        %v897 = vsub.f32 %v369, %v896
        %v898 = vand.u32 %v897, 4294901760
        %899 = vmatmul.mubr.f32.gmra.mrb[0].mxu0 %v898
        %v900 = vpop.f32.mrb[0].mxu0
        %v901 = vadd.f32 %v767, %v900
        %v902 = vpop.f32.mrb[0].mxu0
        %v903 = vadd.f32 %v769, %v902
        %904 = vmatprep.mubr.f32.mxu0 0.0
        %v905 = vand.u32 %v372, 4294901760
        %v906 = vsub.f32 %v372, %v905
        %v907 = vand.u32 %v906, 4294901760
        %908 = vmatmul.mubr.f32.gmra.mrb[0].mxu0 %v907
        %v909 = vpop.f32.mrb[0].mxu0
        %v910 = vadd.f32 %v775, %v909
        %v911 = vpop.f32.mrb[0].mxu0
        %v912 = vadd.f32 %v777, %v911
        %913 = vmatprep.mubr.f32.mxu0 0.0
        %v914 = vand.u32 %v375, 4294901760
        %v915 = vsub.f32 %v375, %v914
        %v916 = vand.u32 %v915, 4294901760
        %917 = vmatmul.mubr.f32.gmra.mrb[0].mxu0 %v916
        %v918 = vpop.f32.mrb[0].mxu0
        %v919 = vadd.f32 %v783, %v918
        %v920 = vpop.f32.mrb[0].mxu0
        %v921 = vadd.f32 %v785, %v920
        %922 = vmatprep.mubr.f32.mxu0 0.0
        %v923 = vand.u32 %v378, 4294901760
        %v924 = vsub.f32 %v378, %v923
        %v925 = vand.u32 %v924, 4294901760
        %926 = vmatmul.mubr.f32.gmra.mrb[0].mxu0 %v925
        %v927 = vpop.f32.mrb[0].mxu0
        %v928 = vadd.f32 %v791, %v927
        %v929 = vpop.f32.mrb[0].mxu0
        %v930 = vadd.f32 %v793, %v929
        %931 = vmatprep.mubr.f32.mxu0 0.0
        %v932 = vand.u32 %v381, 4294901760
        %v933 = vsub.f32 %v381, %v932
        %v934 = vand.u32 %v933, 4294901760
        %935 = vmatmul.mubr.f32.gmra.mrb[0].mxu0 %v934
        %v936 = vpop.f32.mrb[0].mxu0
        %v937 = vadd.f32 %v799, %v936
        %v938 = vpop.f32.mrb[0].mxu0
        %v939 = vadd.f32 %v801, %v938
        %940 = vmatprep.mubr.f32.mxu0 0.0
        %v941 = vand.u32 %v384, 4294901760
        %v942 = vsub.f32 %v384, %v941
        %v943 = vand.u32 %v942, 4294901760
        %944 = vmatmul.mubr.f32.gmra.mrb[0].mxu0 %v943
        %v945 = vpop.f32.mrb[0].mxu0
        %v946 = vadd.f32 %v807, %v945
        %v947 = vpop.f32.mrb[0].mxu0
        %v948 = vadd.f32 %v809, %v947
        %949 = vmatprep.mubr.f32.mxu0 0.0
        %v950 = vand.u32 %v387, 4294901760
        %v951 = vsub.f32 %v387, %v950
        %v952 = vand.u32 %v951, 4294901760
        %953 = vmatmul.mubr.f32.gmra.mrb[0].mxu0 %v952
        %v954 = vpop.f32.mrb[0].mxu0
        %v955 = vadd.f32 %v815, %v954
        %v956 = vpop.f32.mrb[0].mxu0
        %v957 = vadd.f32 %v817, %v956
        %958 = vmatprep.mubr.f32.mxu0 0.0
        %v959 = vand.u32 %v390, 4294901760
        %v960 = vsub.f32 %v390, %v959
        %v961 = vand.u32 %v960, 4294901760
        %962 = vmatmul.mubr.f32.gmra.mrb[0].mxu0 %v961
        %v963 = vpop.f32.mrb[0].mxu0
        %v964 = vadd.f32 %v823, %v963
        %v965 = vpop.f32.mrb[0].mxu0
        %v966 = vadd.f32 %v825, %v965
        %967 = vdwg.mxu0
        %v968 = vand.u32 %v292, 4294901760
        %v969 = vsub.f32 %v292, %v968
        %v970 = vand.u32 %v969, 4294901760
        %971 = vmatprep.subr.mxu0 %v970
        %v972 = vand.u32 %v291, 4294901760
        %v973 = vsub.f32 %v291, %v972
        %v974 = vand.u32 %v973, 4294901760
        %975 = vmatpush1.msra.mxu0 %v974
        %v976 = vand.u32 %v294, 4294901760
        %v977 = vsub.f32 %v294, %v976
        %v978 = vand.u32 %v977, 4294901760
        %979 = vmatprep.subr.mxu0 %v978
        %v980 = vand.u32 %v293, 4294901760
        %v981 = vsub.f32 %v293, %v980
        %v982 = vand.u32 %v981, 4294901760
        %983 = vmatpush1.msra.mxu0 %v982
        %984 = vmatprep.subr.mxu0 0.0
        %985 = vmatpush1.msra.mxu0 0.0
        %986 = vmatprep.subr.mxu0 0.0
        %987 = vmatpush1.msra.mxu0 0.0
        %988 = vmatprep.subr.mxu0 0.0
        %989 = vmatpush1.msra.mxu0 0.0
        %990 = vmatprep.subr.mxu0 0.0
        %991 = vmatpush1.msra.mxu0 0.0
        %992 = vmatprep.subr.mxu0 0.0
        %993 = vmatpush1.msra.mxu0 0.0
        %994 = vmatprep.subr.mxu0 0.0
        %995 = vmatpush1.msra.mxu0 0.0
        %996 = vmatprep.subr.mxu0 0.0
        %997 = vmatpush1.msra.mxu0 0.0
        %998 = vmatprep.subr.mxu0 0.0
        %999 = vmatpush1.msra.mxu0 0.0
        %1000 = vmatprep.subr.mxu0 0.0
        %1001 = vmatpush1.msra.mxu0 0.0
        %1002 = vmatprep.subr.mxu0 0.0
        %1003 = vmatpush1.msra.mxu0 0.0
        %1004 = vmatprep.subr.mxu0 0.0
        %1005 = vmatpush1.msra.mxu0 0.0
        %1006 = vmatprep.subr.mxu0 0.0
        %1007 = vmatpush1.msra.mxu0 0.0
        %1008 = vmatprep.subr.mxu0 0.0
        %1009 = vmatpush1.msra.mxu0 0.0
        %1010 = vmatprep.subr.mxu0 0.0
        %1011 = vmatpush1.msra.mxu0 0.0
        %1012 = vmatprep.subr.mxu0 0.0
        %1013 = vmatpush1.msra.mxu0 0.0
        %1014 = vmatprep.subr.mxu0 0.0
        %1015 = vmatpush1.msra.mxu0 0.0
        %1016 = vmatprep.subr.mxu0 0.0
        %1017 = vmatpush1.msra.mxu0 0.0
        %1018 = vmatprep.subr.mxu0 0.0
        %1019 = vmatpush1.msra.mxu0 0.0
        %1020 = vmatprep.subr.mxu0 0.0
        %1021 = vmatpush1.msra.mxu0 0.0
        %1022 = vmatprep.subr.mxu0 0.0
        %1023 = vmatpush1.msra.mxu0 0.0
        %1024 = vmatprep.subr.mxu0 0.0
        %1025 = vmatpush1.msra.mxu0 0.0
        %1026 = vmatprep.subr.mxu0 0.0
        %1027 = vmatpush1.msra.mxu0 0.0
        %1028 = vmatprep.subr.mxu0 0.0
        %1029 = vmatpush1.msra.mxu0 0.0
        %1030 = vmatprep.subr.mxu0 0.0
        %1031 = vmatpush1.msra.mxu0 0.0
        %1032 = vmatprep.subr.mxu0 0.0
        %1033 = vmatpush1.msra.mxu0 0.0
        %1034 = vmatprep.subr.mxu0 0.0
        %1035 = vmatpush1.msra.mxu0 0.0
        %1036 = vmatprep.subr.mxu0 0.0
        %1037 = vmatpush1.msra.mxu0 0.0
        %1038 = vmatprep.subr.mxu0 0.0
        %1039 = vmatpush1.msra.mxu0 0.0
        %1040 = vmatprep.subr.mxu0 0.0
        %1041 = vmatpush1.msra.mxu0 0.0
        %1042 = vmatprep.subr.mxu0 0.0
        %1043 = vmatpush1.msra.mxu0 0.0
        %1044 = vmatprep.mubr.f32.mxu0 0.0
        %v1045 = vand.u32 %v369, 4294901760
        %1046 = vmatmul.mubr.f32.gmra.mrb[0].mxu0 %v1045
        %v1047 = vpop.f32.mrb[0].mxu0
        %v1048 = vadd.f32 %v901, %v1047
        %v1049 = vpop.f32.mrb[0].mxu0
        %v1050 = vadd.f32 %v903, %v1049
        %1051 = vmatprep.mubr.f32.mxu0 0.0
        %v1052 = vand.u32 %v372, 4294901760
        %1053 = vmatmul.mubr.f32.gmra.mrb[0].mxu0 %v1052
        %v1054 = vpop.f32.mrb[0].mxu0
        %v1055 = vadd.f32 %v910, %v1054
        %v1056 = vpop.f32.mrb[0].mxu0
        %v1057 = vadd.f32 %v912, %v1056
        %1058 = vmatprep.mubr.f32.mxu0 0.0
        %v1059 = vand.u32 %v375, 4294901760
        %1060 = vmatmul.mubr.f32.gmra.mrb[0].mxu0 %v1059
        %v1061 = vpop.f32.mrb[0].mxu0
        %v1062 = vadd.f32 %v919, %v1061
        %v1063 = vpop.f32.mrb[0].mxu0
        %v1064 = vadd.f32 %v921, %v1063
        %1065 = vmatprep.mubr.f32.mxu0 0.0
        %v1066 = vand.u32 %v378, 4294901760
        %1067 = vmatmul.mubr.f32.gmra.mrb[0].mxu0 %v1066
        %v1068 = vpop.f32.mrb[0].mxu0
        %v1069 = vadd.f32 %v928, %v1068
        %v1070 = vpop.f32.mrb[0].mxu0
        %v1071 = vadd.f32 %v930, %v1070
        %1072 = vmatprep.mubr.f32.mxu0 0.0
        %v1073 = vand.u32 %v381, 4294901760
        %1074 = vmatmul.mubr.f32.gmra.mrb[0].mxu0 %v1073
        %v1075 = vpop.f32.mrb[0].mxu0
        %v1076 = vadd.f32 %v937, %v1075
        %v1077 = vpop.f32.mrb[0].mxu0
        %v1078 = vadd.f32 %v939, %v1077
        %1079 = vmatprep.mubr.f32.mxu0 0.0
        %v1080 = vand.u32 %v384, 4294901760
        %1081 = vmatmul.mubr.f32.gmra.mrb[0].mxu0 %v1080
        %v1082 = vpop.f32.mrb[0].mxu0
        %v1083 = vadd.f32 %v946, %v1082
        %v1084 = vpop.f32.mrb[0].mxu0
        %v1085 = vadd.f32 %v948, %v1084
        %1086 = vmatprep.mubr.f32.mxu0 0.0
        %v1087 = vand.u32 %v387, 4294901760
        %1088 = vmatmul.mubr.f32.gmra.mrb[0].mxu0 %v1087
        %v1089 = vpop.f32.mrb[0].mxu0
        %v1090 = vadd.f32 %v955, %v1089
        %v1091 = vpop.f32.mrb[0].mxu0
        %v1092 = vadd.f32 %v957, %v1091
        %1093 = vmatprep.mubr.f32.mxu0 0.0
        %v1094 = vand.u32 %v390, 4294901760
        %1095 = vmatmul.mubr.f32.gmra.mrb[0].mxu0 %v1094
        %v1096 = vpop.f32.mrb[0].mxu0
        %v1097 = vadd.f32 %v964, %v1096
        %v1098 = vpop.f32.mrb[0].mxu0
        %v1099 = vadd.f32 %v966, %v1098
        %1100 = vdwg.mxu0
        %v1101 = vand.u32 %v292, 4294901760
        %1102 = vmatprep.subr.mxu0 %v1101
        %v1103 = vand.u32 %v291, 4294901760
        %1104 = vmatpush1.msra.mxu0 %v1103
        %v1105 = vand.u32 %v294, 4294901760
        %1106 = vmatprep.subr.mxu0 %v1105
        %v1107 = vand.u32 %v293, 4294901760
        %1108 = vmatpush1.msra.mxu0 %v1107
        %1109 = vmatprep.subr.mxu0 0.0
        %1110 = vmatpush1.msra.mxu0 0.0
        %1111 = vmatprep.subr.mxu0 0.0
        %1112 = vmatpush1.msra.mxu0 0.0
        %1113 = vmatprep.subr.mxu0 0.0
        %1114 = vmatpush1.msra.mxu0 0.0
        %1115 = vmatprep.subr.mxu0 0.0
        %1116 = vmatpush1.msra.mxu0 0.0
        %1117 = vmatprep.subr.mxu0 0.0
        %1118 = vmatpush1.msra.mxu0 0.0
        %1119 = vmatprep.subr.mxu0 0.0
        %1120 = vmatpush1.msra.mxu0 0.0
        %1121 = vmatprep.subr.mxu0 0.0
        %1122 = vmatpush1.msra.mxu0 0.0
        %1123 = vmatprep.subr.mxu0 0.0
        %1124 = vmatpush1.msra.mxu0 0.0
        %1125 = vmatprep.subr.mxu0 0.0
        %1126 = vmatpush1.msra.mxu0 0.0
        %1127 = vmatprep.subr.mxu0 0.0
        %1128 = vmatpush1.msra.mxu0 0.0
        %1129 = vmatprep.subr.mxu0 0.0
        %1130 = vmatpush1.msra.mxu0 0.0
        %1131 = vmatprep.subr.mxu0 0.0
        %1132 = vmatpush1.msra.mxu0 0.0
        %1133 = vmatprep.subr.mxu0 0.0
        %1134 = vmatpush1.msra.mxu0 0.0
        %1135 = vmatprep.subr.mxu0 0.0
        %1136 = vmatpush1.msra.mxu0 0.0
        %1137 = vmatprep.subr.mxu0 0.0
        %1138 = vmatpush1.msra.mxu0 0.0
        %1139 = vmatprep.subr.mxu0 0.0
        %1140 = vmatpush1.msra.mxu0 0.0
        %1141 = vmatprep.subr.mxu0 0.0
        %1142 = vmatpush1.msra.mxu0 0.0
        %1143 = vmatprep.subr.mxu0 0.0
        %1144 = vmatpush1.msra.mxu0 0.0
        %1145 = vmatprep.subr.mxu0 0.0
        %1146 = vmatpush1.msra.mxu0 0.0
        %1147 = vmatprep.subr.mxu0 0.0
        %1148 = vmatpush1.msra.mxu0 0.0
        %1149 = vmatprep.subr.mxu0 0.0
        %1150 = vmatpush1.msra.mxu0 0.0
        %1151 = vmatprep.subr.mxu0 0.0
        %1152 = vmatpush1.msra.mxu0 0.0
        %1153 = vmatprep.subr.mxu0 0.0
        %1154 = vmatpush1.msra.mxu0 0.0
        %1155 = vmatprep.subr.mxu0 0.0
        %1156 = vmatpush1.msra.mxu0 0.0
        %1157 = vmatprep.subr.mxu0 0.0
        %1158 = vmatpush1.msra.mxu0 0.0
        %1159 = vmatprep.subr.mxu0 0.0
        %1160 = vmatpush1.msra.mxu0 0.0
        %1161 = vmatprep.subr.mxu0 0.0
        %1162 = vmatpush1.msra.mxu0 0.0
        %1163 = vmatprep.subr.mxu0 0.0
        %1164 = vmatpush1.msra.mxu0 0.0
        %1165 = vmatprep.subr.mxu0 0.0
        %1166 = vmatpush1.msra.mxu0 0.0
        %1167 = vmatprep.subr.mxu0 0.0
        %1168 = vmatpush1.msra.mxu0 0.0
        %1169 = vmatprep.mubr.f32.mxu0 0.0
        %v1170 = vand.u32 %v369, 4294901760
        %1171 = vmatmul.mubr.f32.gmra.mrb[0].mxu0 %v1170
        %v1172 = vpop.f32.mrb[0].mxu0
        %v1173 = vadd.f32 %v1048, %v1172
        %v1174 = vpop.f32.mrb[0].mxu0
        %v1175 = vadd.f32 %v1050, %v1174
        %1176 = vmatprep.mubr.f32.mxu0 0.0
        %v1177 = vand.u32 %v372, 4294901760
        %1178 = vmatmul.mubr.f32.gmra.mrb[0].mxu0 %v1177
        %v1179 = vpop.f32.mrb[0].mxu0
        %v1180 = vadd.f32 %v1055, %v1179
        %v1181 = vpop.f32.mrb[0].mxu0
        %v1182 = vadd.f32 %v1057, %v1181
        %1183 = vmatprep.mubr.f32.mxu0 0.0
        %v1184 = vand.u32 %v375, 4294901760
        %1185 = vmatmul.mubr.f32.gmra.mrb[0].mxu0 %v1184
        %v1186 = vpop.f32.mrb[0].mxu0
        %v1187 = vadd.f32 %v1062, %v1186
        %v1188 = vpop.f32.mrb[0].mxu0
        %v1189 = vadd.f32 %v1064, %v1188
        %1190 = vmatprep.mubr.f32.mxu0 0.0
        %v1191 = vand.u32 %v378, 4294901760
        %1192 = vmatmul.mubr.f32.gmra.mrb[0].mxu0 %v1191
        %v1193 = vpop.f32.mrb[0].mxu0
        %v1194 = vadd.f32 %v1069, %v1193
        %v1195 = vpop.f32.mrb[0].mxu0
        %v1196 = vadd.f32 %v1071, %v1195
        %1197 = vmatprep.mubr.f32.mxu0 0.0
        %v1198 = vand.u32 %v381, 4294901760
        %1199 = vmatmul.mubr.f32.gmra.mrb[0].mxu0 %v1198
        %v1200 = vpop.f32.mrb[0].mxu0
        %v1201 = vadd.f32 %v1076, %v1200
        %v1202 = vpop.f32.mrb[0].mxu0
        %v1203 = vadd.f32 %v1078, %v1202
        %1204 = vmatprep.mubr.f32.mxu0 0.0
        %v1205 = vand.u32 %v384, 4294901760
        %1206 = vmatmul.mubr.f32.gmra.mrb[0].mxu0 %v1205
        %v1207 = vpop.f32.mrb[0].mxu0
        %v1208 = vadd.f32 %v1083, %v1207
        %v1209 = vpop.f32.mrb[0].mxu0
        %v1210 = vadd.f32 %v1085, %v1209
        %1211 = vmatprep.mubr.f32.mxu0 0.0
        %v1212 = vand.u32 %v387, 4294901760
        %1213 = vmatmul.mubr.f32.gmra.mrb[0].mxu0 %v1212
        %v1214 = vpop.f32.mrb[0].mxu0
        %v1215 = vadd.f32 %v1090, %v1214
        %v1216 = vpop.f32.mrb[0].mxu0
        %v1217 = vadd.f32 %v1092, %v1216
        %1218 = vmatprep.mubr.f32.mxu0 0.0
        %v1219 = vand.u32 %v390, 4294901760
        %1220 = vmatmul.mubr.f32.gmra.mrb[0].mxu0 %v1219
        %v1221 = vpop.f32.mrb[0].mxu0
        %v1222 = vadd.f32 %v1097, %v1221
        %v1223 = vpop.f32.mrb[0].mxu0
        %v1224 = vadd.f32 %v1099, %v1223
        %1225 = vdwg.mxu0
        %v1226 = vmul.f32 %v1173, %v363
        %v1227 = vmul.f32 %v1175, %v364
        %v1228 = vmul.f32 %v1180, %v365
        %v1229 = vmul.f32 %v1182, %v366
        %v1230 = vadd.f32 %v1226, %v1228
        %v1231 = vrot.slane %v1230, 4
        %v1232 = vadd.f32 %v1230, %v1231
        %v1233 = vrot.slane %v1232, 2
        %v1234 = vadd.f32 %v1232, %v1233
        %v1235 = vrot.slane %v1234, 1
        %v1236 = vadd.f32 %v1234, %v1235
        %v1237 = vadd.f32 %v1227, %v1229
        %v1238 = vrot.slane %v1237, 4
        %v1239 = vadd.f32 %v1237, %v1238
        %v1240 = vrot.slane %v1239, 2
        %v1241 = vadd.f32 %v1239, %v1240
        %v1242 = vrot.slane %v1241, 1
        %v1243 = vadd.f32 %v1241, %v1242
        %v1244 = vmul.f32 %v1187, %v363
        %v1245 = vmul.f32 %v1189, %v364
        %v1246 = vmul.f32 %v1194, %v365
        %v1247 = vmul.f32 %v1196, %v366
        %v1248 = vadd.f32 %v1244, %v1246
        %v1249 = vrot.slane %v1248, 4
        %v1250 = vadd.f32 %v1248, %v1249
        %v1251 = vrot.slane %v1250, 2
        %v1252 = vadd.f32 %v1250, %v1251
        %v1253 = vrot.slane %v1252, 1
        %v1254 = vadd.f32 %v1252, %v1253
        %v1255 = vadd.f32 %v1245, %v1247
        %v1256 = vrot.slane %v1255, 4
        %v1257 = vadd.f32 %v1255, %v1256
        %v1258 = vrot.slane %v1257, 2
        %v1259 = vadd.f32 %v1257, %v1258
        %v1260 = vrot.slane %v1259, 1
        %v1261 = vadd.f32 %v1259, %v1260
        %v1262 = vmul.f32 %v1201, %v363
        %v1263 = vmul.f32 %v1203, %v364
        %v1264 = vmul.f32 %v1208, %v365
        %v1265 = vmul.f32 %v1210, %v366
        %v1266 = vadd.f32 %v1262, %v1264
        %v1267 = vrot.slane %v1266, 4
        %v1268 = vadd.f32 %v1266, %v1267
        %v1269 = vrot.slane %v1268, 2
        %v1270 = vadd.f32 %v1268, %v1269
        %v1271 = vrot.slane %v1270, 1
        %v1272 = vadd.f32 %v1270, %v1271
        %v1273 = vadd.f32 %v1263, %v1265
        %v1274 = vrot.slane %v1273, 4
        %v1275 = vadd.f32 %v1273, %v1274
        %v1276 = vrot.slane %v1275, 2
        %v1277 = vadd.f32 %v1275, %v1276
        %v1278 = vrot.slane %v1277, 1
        %v1279 = vadd.f32 %v1277, %v1278
        %v1280 = vmul.f32 %v1215, %v363
        %v1281 = vmul.f32 %v1217, %v364
        %v1282 = vmul.f32 %v1222, %v365
        %v1283 = vmul.f32 %v1224, %v366
        %v1284 = vadd.f32 %v1280, %v1282
        %v1285 = vrot.slane %v1284, 4
        %v1286 = vadd.f32 %v1284, %v1285
        %v1287 = vrot.slane %v1286, 2
        %v1288 = vadd.f32 %v1286, %v1287
        %v1289 = vrot.slane %v1288, 1
        %v1290 = vadd.f32 %v1288, %v1289
        %v1291 = vadd.f32 %v1281, %v1283
        %v1292 = vrot.slane %v1291, 4
        %v1293 = vadd.f32 %v1291, %v1292
        %v1294 = vrot.slane %v1293, 2
        %v1295 = vadd.f32 %v1293, %v1294
        %v1296 = vrot.slane %v1295, 1
        %v1297 = vadd.f32 %v1295, %v1296
        %vm1298 = vcmask 1040384
        %v1299 = vsel %vm1298, %v1236, %v1254
        %v1300 = vsel %vm1298, %v1243, %v1261
        %vm1301 = vcmask 1041408
        %v1302 = vsel %vm1301, %v1299, %v1272
        %v1303 = vsel %vm1301, %v1300, %v1279
        %vm1304 = vcmask 1042432
        %v1305 = vsel %vm1304, %v1302, %v1290
        %v1306 = vsel %vm1304, %v1303, %v1297
        %v1309 = vcombine.low %v1305, %v1306
        %1311 = vst [vmem:[%s176] sm:$0xff] %v1309
        %s1312 = sand.u32 %s92, 1
        %s1313 = scalar_lea.sflag [#allocation3], %s1312
        %s1314 = sand.u32 %s92, 1
        %s1315 = smul.addr %s1314, 8
        %s1316 = scalar_lea.vmem [#allocation2], %s1315
        // Predicated region
        $region29: #{tpu_custom_call.1} parent=27 // pred_check
          %p1317 = pneg %p102
        $region30: #{tpu_custom_call.1} parent=27 // pred_check_branch
          %1319 = sbr.rel (%p1317) target = $region32
        $region31: #{tpu_custom_call.1} parent=27 // pred_region
          %s1320 = smul.u32 2, %s21
          %s1322 = ssub.s32 128, 128
          %1323 = vsyncadd %s1313, %s1322
          %s1324 = smul.addr %s20, 2
          %s1325 = sadd.s32 %s1320, %s1324
          %s1326 = smul.addr %s1325, 64
          %s1327 = scalar_lea.hbm %s2, %s1326
          %s1329 = sshll.u32 %s1316, 4
          %s1330 = int_to_ptr.vmem [resolvable:$true] %s1329
          %1332 = dma.vmem_to_hbm [thread:$0]  %s1330, 128, %s1327, %s1313
        $region32: #{tpu_custom_call.1} parent=27 // pred_fallthru
          _
      $region28: #{tpu_custom_call.1} parent=5 // pred_fallthru
        _
      %p1333 = scmp.le.s32.totalorder 2, %s11
      // Predicated region
      $region33: #{tpu_custom_call.1} parent=5 // pred_check
        %p1334 = pneg %p1333
      $region34: #{tpu_custom_call.1} parent=5 // pred_check_branch
        %1336 = sbr.rel (%p1334) target = $region36
      $region35: #{tpu_custom_call.1} parent=5 // pred_region
        %s1337 = ssub.s32 %s11, 2
        // Predicated region
        $region37: #{tpu_custom_call.1} parent=35 // pred_check
          %p1338 = pneg %p108
        $region38: #{tpu_custom_call.1} parent=35 // pred_check_branch
          %1340 = sbr.rel (%p1338) target = $region40
        $region39: #{tpu_custom_call.1} parent=35 // pred_region
          %s1341 = sand.u32 %s93, 1
          %s1342 = scalar_lea.sflag [#allocation3], %s1341
          %s1343 = sand.u32 %s93, 1
          %s1344 = smul.addr %s1343, 8
          %s1345 = scalar_lea.vmem [#allocation2], %s1344
          %1346 = dma.done %s1342, 128
        $region40: #{tpu_custom_call.1} parent=35 // pred_fallthru
          _
      $region36: #{tpu_custom_call.1} parent=5 // pred_fallthru
        _
    $region6: #{tpu_custom_call.1} parent=1 // loop_footer
      %s15 = sadd.s32 1, %s11
    $region7: #{tpu_custom_call.1} parent=1 // loop_footer_branch
      %10 = sbr.rel target = $region3
    $region8: #{tpu_custom_call.1} parent=1 // loop_exit
      _
    %1347 = vsyncpa [#allocation3], 1
    %s1348 = scalar_lea.sflag [#allocation3], 1
    %1349 = vsyncpa %s1348, 1

</llo_original>
